<compile_context>
chip_gen: v7x
topology: tpu7x:2x2x1
jax: 0.10.0
libtpu: 0.0.40
codegen_flags: <defaults>
</compile_context>

<pallas_src>
import jax
import jax.numpy as jnp
from jax.experimental import pallas as pl
from jax.experimental.pallas import tpu as pltpu

_BN_EPS = 1e-5
_LANES = 128


def _rup(c, m=_LANES):
    return ((c + m - 1) // m) * m


# ----------------------------- Pallas kernels ------------------------------

def _make_conv_kernel(k, s, ho, wo):
    """k x k conv (phase-decomposed stride s) as k*k accumulated GEMMs.

    Inputs : s*s phase refs (1, Hph, Wph, Cin_pad) bf16, weights
             (k*k, Cin_pad, Cout_pad) bf16.
    Outputs: pre-BN conv result (1, ho*wo, Cout_pad) f32 and per-image BN
             partial stats (1, 2, Cout_pad) = [channel sum; channel sumsq].
    """
    n_phases = s * s
    m = ho * wo

    def kernel(*refs):
        phase_refs = refs[:n_phases]
        w_ref = refs[n_phases]
        y_ref, st_ref = refs[n_phases + 1], refs[n_phases + 2]

        acc = None
        for dy in range(k):
            for dx in range(k):
                p = (dy % s) * s + (dx % s)          # which stride-phase
                o0, o1 = dy // s, dx // s            # stride-1 offset in it
                xt = phase_refs[p][0, o0:o0 + ho, o1:o1 + wo, :]
                contrib = jnp.dot(xt.reshape(m, xt.shape[-1]),
                                  w_ref[dy * k + dx],
                                  preferred_element_type=jnp.float32)
                acc = contrib if acc is None else acc + contrib

        y_ref[0] = acc                                           # lane-dense f32
        st_ref[0, 0:1, :] = jnp.sum(acc, axis=0, keepdims=True)
        st_ref[0, 1:2, :] = jnp.sum(acc * acc, axis=0, keepdims=True)

    return kernel


def _make_finalize_kernel(res_mode, inv_m):
    """Fused train-mode BN affine (+ optional residual / residual-BN) + ReLU."""

    def bn_coeffs(st, gb):
        mean = st[0:1, :] * inv_m
        var = jnp.maximum(st[1:2, :] * inv_m - mean * mean, 0.0)  # biased var
        scale = gb[0:1, :] * jax.lax.rsqrt(var + _BN_EPS)
        shift = gb[1:2, :] - mean * scale
        return scale, shift

    if res_mode == "none":
        def kernel(y_ref, st_ref, gb_ref, o_ref):
            scale, shift = bn_coeffs(st_ref[...], gb_ref[...])
            o_ref[0] = jnp.maximum(y_ref[0] * scale + shift, 0.0).astype(o_ref.dtype)
    elif res_mode == "identity":
        def kernel(y_ref, st_ref, gb_ref, r_ref, o_ref):
            scale, shift = bn_coeffs(st_ref[...], gb_ref[...])
            v = y_ref[0] * scale + shift + r_ref[0]
            o_ref[0] = jnp.maximum(v, 0.0).astype(o_ref.dtype)
    else:  # "bn": residual is a raw shortcut-conv output needing its own BN
        def kernel(y_ref, st_ref, gb_ref, r_ref, rst_ref, rgb_ref, o_ref):
            scale, shift = bn_coeffs(st_ref[...], gb_ref[...])
            rscale, rshift = bn_coeffs(rst_ref[...], rgb_ref[...])
            v = (y_ref[0] * scale + shift) + (r_ref[0] * rscale + rshift)
            o_ref[0] = jnp.maximum(v, 0.0).astype(o_ref.dtype)

    return kernel


# ------------------------------ kernel wrappers -----------------------------

def _conv_and_stats(phases, w_packed, k, s, ho, wo):
    n = phases[0].shape[0]
    cout_p = w_packed.shape[-1]
    m = ho * wo
    in_specs = [pl.BlockSpec((1,) + p.shape[1:], lambda i: (i, 0, 0, 0))
                for p in phases]
    in_specs.append(pl.BlockSpec(w_packed.shape, lambda i: (0, 0, 0)))
    y, st = pl.pallas_call(
        _make_conv_kernel(k, s, ho, wo),
        grid=(n,),
        in_specs=in_specs,
        out_specs=(pl.BlockSpec((1, m, cout_p), lambda i: (i, 0, 0)),
                   pl.BlockSpec((1, 2, cout_p), lambda i: (i, 0, 0))),
        out_shape=(jax.ShapeDtypeStruct((n, m, cout_p), jnp.float32),
                   jax.ShapeDtypeStruct((n, 2, cout_p), jnp.float32)),
        compiler_params=pltpu.CompilerParams(dimension_semantics=("parallel",)),
    )(*phases, w_packed)
    return y, jnp.sum(st, axis=0)           # total (2, Cout_pad) over N*Ho*Wo


def _finalize(y, st, gb, *, inv_m, out_dtype,
              residual=None, res_st=None, res_gb=None):
    n, m, cp = y.shape
    big = pl.BlockSpec((1, m, cp), lambda i: (i, 0, 0))
    small = pl.BlockSpec((2, cp), lambda i: (0, 0))
    if residual is None:
        mode, args, in_specs = "none", (y, st, gb), [big, small, small]
    elif res_st is None:
        mode, args, in_specs = "identity", (y, st, gb, residual), [big, small, small, big]
    else:
        mode, args = "bn", (y, st, gb, residual, res_st, res_gb)
        in_specs = [big, small, small, big, small, small]
    return pl.pallas_call(
        _make_finalize_kernel(mode, inv_m),
        grid=(n,),
        in_specs=in_specs,
        out_specs=big,
        out_shape=jax.ShapeDtypeStruct((n, m, cp), out_dtype),
        compiler_params=pltpu.CompilerParams(dimension_semantics=("parallel",)),
    )(*args)


# ------------------------------ JAX glue ------------------------------------

def _pad_channels(x, cp):
    c = x.shape[-1]
    return x if c == cp else jnp.pad(x, [(0, 0)] * (x.ndim - 1) + [(0, cp - c)])


def _pack_weight(w_oihw, cin_p, cout_p):
    """Torch (Cout,Cin,kh,kw) -> (kh*kw, Cin_pad, Cout_pad) bf16, channels lane-padded."""
    cout, cin, kh, kw = w_oihw.shape
    w = jnp.transpose(w_oihw, (2, 3, 1, 0)).reshape(kh * kw, cin, cout)
    w = jnp.pad(w, ((0, 0), (0, cin_p - cin), (0, cout_p - cout)))
    return w.astype(jnp.bfloat16)


def _pack_gamma_beta(gamma, beta, cout_p):
    g = jnp.pad(gamma.astype(jnp.float32), (0, cout_p - gamma.shape[0]))
    b = jnp.pad(beta.astype(jnp.float32), (0, cout_p - beta.shape[0]))
    return jnp.stack([g, b], axis=0)          # packed (2, Cout_pad)


def _phase_split(x_padded, stride):
    """Space-to-depth phase split so strided taps become stride-1 slices."""
    if stride == 1:
        return [x_padded]
    return [x_padded[:, py::stride, px::stride, :]
            for py in range(stride) for px in range(stride)]


def init_basic_block_params(key, in_planes, planes, stride):
    """Parameter init mirroring nn.Conv2d / nn.BatchNorm2d defaults."""
    k1, k2, k3 = jax.random.split(key, 3)

    def conv_init(k, cout, cin, kh, kw):
        fan_in = cin * kh * kw
        bound = 1.0 / (fan_in ** 0.5)
        return jax.random.uniform(k, (cout, cin, kh, kw), jnp.float32, -bound, bound)

    params = {
        "conv1_w": conv_init(k1, planes, in_planes, 3, 3),
        "bn1_gamma": jnp.ones((planes,), jnp.float32),
        "bn1_beta": jnp.zeros((planes,), jnp.float32),
        "conv2_w": conv_init(k2, planes, planes, 3, 3),
        "bn2_gamma": jnp.ones((planes,), jnp.float32),
        "bn2_beta": jnp.zeros((planes,), jnp.float32),
    }
    if stride != 1 or in_planes != planes:
        params["convs_w"] = conv_init(k3, planes, in_planes, 1, 1)
        params["bns_gamma"] = jnp.ones((planes,), jnp.float32)
        params["bns_beta"] = jnp.zeros((planes,), jnp.float32)
    return params


def basic_block_forward(params, x_nchw, stride):
    """BasicBlock.forward.  Input/output are NCHW float32 (PyTorch convention)."""
    x = jnp.transpose(x_nchw, (0, 2, 3, 1)).astype(jnp.float32)   # NHWC once
    n, h, w, cin = x.shape
    planes = params["conv1_w"].shape[0]
    cin_p, cout_p = _rup(cin), _rup(planes)

    ho = (h + 2 - 3) // stride + 1
    wo = (w + 2 - 3) // stride + 1
    inv_m = 1.0 / float(n * ho * wo)

    x_p = _pad_channels(x, cin_p)                 # (N,H,W,Cin_pad) f32
    x_bf = x_p.astype(jnp.bfloat16)               # MXU-side copy

    # ---- conv1 (3x3, stride, pad 1) + BN partial stats --------------------
    xp1 = jnp.pad(x_bf, ((0, 0), (1, 1), (1, 1), (0, 0)))
    y1, st1 = _conv_and_stats(_phase_split(xp1, stride),
                              _pack_weight(params["conv1_w"], cin_p, cout_p),
                              3, stride, ho, wo)
    gb1 = _pack_gamma_beta(params["bn1_gamma"], params["bn1_beta"], cout_p)
    # fused BN + ReLU, emitted directly as bf16 (conv2's MXU input dtype)
    out1 = _finalize(y1, st1, gb1, inv_m=inv_m, out_dtype=jnp.bfloat16)

    # ---- conv2 (3x3, stride 1, pad 1) + BN partial stats -------------------
    xp2 = jnp.pad(out1.reshape(n, ho, wo, cout_p), ((0, 0), (1, 1), (1, 1), (0, 0)))
    y2, st2 = _conv_and_stats([xp2],
                              _pack_weight(params["conv2_w"], cout_p, cout_p),
                              3, 1, ho, wo)
    gb2 = _pack_gamma_beta(params["bn2_gamma"], params["bn2_beta"], cout_p)

    # ---- shortcut + fused BN2 + residual + ReLU -----------------------------
    if "convs_w" in params:
        xs = x_bf[:, ::stride, ::stride, :]       # 1x1 stride-s conv == decimated GEMM
        ys, sts = _conv_and_stats([xs],
                                  _pack_weight(params["convs_w"], cin_p, cout_p),
                                  1, 1, ho, wo)
        gbs = _pack_gamma_beta(params["bns_gamma"], params["bns_beta"], cout_p)
        out = _finalize(y2, st2, gb2, inv_m=inv_m, out_dtype=jnp.float32,
                        residual=ys, res_st=sts, res_gb=gbs)
    else:
        # identity shortcut (stride==1 and cin==planes): add the f32 input
        out = _finalize(y2, st2, gb2, inv_m=inv_m, out_dtype=jnp.float32,
                        residual=x_p.reshape(n, h * w, cin_p))

    out = out.reshape(n, ho, wo, cout_p)[..., :planes]
    return jnp.transpose(out, (0, 3, 1, 2))       # back to NCHW once


# --------------------------- pure-JAX reference ------------------------------

def _reference_forward(params, x_nchw, stride, quantize_inputs=False):
    """XLA reference.  quantize_inputs=True rounds every conv input/weight to
    bf16 (mirroring the kernel's MXU precision) so the comparison tolerance
    can stay tight; quantize_inputs=False is the exact f32 module semantics."""
    x = x_nchw.astype(jnp.float32)

    def conv(v, wgt, s, pad):
        if quantize_inputs:
            v = v.astype(jnp.bfloat16).astype(jnp.float32)
            wgt = wgt.astype(jnp.bfloat16).astype(jnp.float32)
        return jax.lax.conv_general_dilated(
            v, wgt, window_strides=(s, s), padding=[(pad, pad), (pad, pad)],
            dimension_numbers=("NCHW", "OIHW", "NCHW"))

    def bn(y, g, b):
        mean = jnp.mean(y, axis=(0, 2, 3), keepdims=True)
        var = jnp.mean(jnp.square(y - mean), axis=(0, 2, 3), keepdims=True)
        return ((y - mean) * jax.lax.rsqrt(var + _BN_EPS)
                * g.reshape(1, -1, 1, 1) + b.reshape(1, -1, 1, 1))

    out = jax.nn.relu(bn(conv(x, params["conv1_w"], stride, 1),
                         params["bn1_gamma"], params["bn1_beta"]))
    out = bn(conv(out, params["conv2_w"], 1, 1),
             params["bn2_gamma"], params["bn2_beta"])
    if "convs_w" in params:
        sc = bn(conv(x, params["convs_w"], stride, 0),
                params["bns_gamma"], params["bns_beta"])
    else:
        sc = x
    return jax.nn.relu(out + sc)


# ---------------------------------- main -------------------------------------

if __name__ == "__main__":
    key = jax.random.PRNGKey(0)
    kx, kp1, kp2 = jax.random.split(key, 3)

    # Input: NCHW, batch=2, in_planes=4, 16x16 spatial.
    x = jax.random.normal(kx, (2, 4, 16, 16), jnp.float32)

    # Case 1: downsampling block (stride=2, 4 -> 8 planes) => conv shortcut.
    params_ds = init_basic_block_params(kp1, 4, 8, 2)
    out_ds = jax.block_until_ready(basic_block_forward(params_ds, x, 2))
    assert out_ds.shape == (2, 8, 8, 8)
    ref_q = _reference_forward(params_ds, x, 2, quantize_inputs=True)
    ref_f = _reference_forward(params_ds, x, 2, quantize_inputs=False)
    assert float(jnp.max(jnp.abs(out_ds - ref_q))) < 2e-2   # tight (bf16-matched)
    assert float(jnp.max(jnp.abs(out_ds - ref_f))) < 1e-1   # sanity vs pure f32

    # Case 2: identity block (stride=1, 4 -> 4 planes) => identity shortcut.
    params_id = init_basic_block_params(kp2, 4, 4, 1)
    out_id = jax.block_until_ready(basic_block_forward(params_id, x, 1))
    assert out_id.shape == (2, 4, 16, 16)
    ref_q = _reference_forward(params_id, x, 1, quantize_inputs=True)
    ref_f = _reference_forward(params_id, x, 1, quantize_inputs=False)
    assert float(jnp.max(jnp.abs(out_id - ref_q))) < 2e-2
    assert float(jnp.max(jnp.abs(out_id - ref_f))) < 1e-1

    print("KERNEL_OK")
</pallas_src>

<mosaic_0001>
module attributes {stable_mosaic.version = 11 : i64} {
  func.func @kernel(%arg0: i32, %arg1: memref<1x9x9x128xbf16, #tpu.memory_space<vmem>>, %arg2: memref<1x9x9x128xbf16, #tpu.memory_space<vmem>>, %arg3: memref<1x9x9x128xbf16, #tpu.memory_space<vmem>>, %arg4: memref<1x9x9x128xbf16, #tpu.memory_space<vmem>>, %arg5: memref<9x128x128xbf16, #tpu.memory_space<vmem>>, %arg6: memref<1x64x128xf32, #tpu.memory_space<vmem>>, %arg7: memref<1x2x128xf32, #tpu.memory_space<vmem>>) attributes {dimension_semantics = [#tpu.dimension_semantics<parallel>], iteration_bounds = array<i64: 2>, scalar_prefetch = 0 : i64, scratch_operands = 0 : i64, tpu.core_type = #tpu.core_type<tc>, window_params = [{transform_indices = @transform_0, window_bounds = array<i64: 1, 9, 9, 128>}, {transform_indices = @transform_1, window_bounds = array<i64: 1, 9, 9, 128>}, {transform_indices = @transform_2, window_bounds = array<i64: 1, 9, 9, 128>}, {transform_indices = @transform_3, window_bounds = array<i64: 1, 9, 9, 128>}, {pipeline_mode = #tpu.pipeline_mode<synchronous>, transform_indices = @transform_4, window_bounds = array<i64: 9, 128, 128>}, {transform_indices = @transform_5, window_bounds = array<i64: 1, 64, 128>}, {transform_indices = @transform_6, window_bounds = array<i64: 1, 2, 128>}]} {
    %c0 = arith.constant 0 : index
    %c0_0 = arith.constant 0 : index
    %c0_1 = arith.constant 0 : index
    %c0_2 = arith.constant 0 : index
    %0 = vector.load %arg1[%c0, %c0_0, %c0_1, %c0_2] : memref<1x9x9x128xbf16, #tpu.memory_space<vmem>>, vector<1x8x8x128xbf16>
    %1 = vector.shape_cast %0 : vector<1x8x8x128xbf16> to vector<8x8x128xbf16>
    %2 = vector.shape_cast %1 : vector<8x8x128xbf16> to vector<64x128xbf16>
    %c0_3 = arith.constant 0 : index
    %c0_4 = arith.constant 0 : index
    %c0_5 = arith.constant 0 : index
    %3 = vector.load %arg5[%c0_3, %c0_4, %c0_5] : memref<9x128x128xbf16, #tpu.memory_space<vmem>>, vector<1x128x128xbf16>
    %4 = vector.shape_cast %3 : vector<1x128x128xbf16> to vector<128x128xbf16>
    %cst = arith.constant dense<0.000000e+00> : vector<64x128xf32>
    %5 = tpu.matmul %2, %4, %cst {dimension_numbers = #tpu.dot_dimension_numbers<[1], [0], [0], [1], [0, 0, 1, 1], [], []>} : vector<64x128xbf16>, vector<128x128xbf16>, vector<64x128xf32> -> vector<64x128xf32>
    %c0_6 = arith.constant 0 : index
    %c0_7 = arith.constant 0 : index
    %c0_8 = arith.constant 0 : index
    %c0_9 = arith.constant 0 : index
    %6 = vector.load %arg2[%c0_6, %c0_7, %c0_8, %c0_9] : memref<1x9x9x128xbf16, #tpu.memory_space<vmem>>, vector<1x8x8x128xbf16>
    %7 = vector.shape_cast %6 : vector<1x8x8x128xbf16> to vector<8x8x128xbf16>
    %8 = vector.shape_cast %7 : vector<8x8x128xbf16> to vector<64x128xbf16>
    %c1 = arith.constant 1 : index
    %c0_10 = arith.constant 0 : index
    %c0_11 = arith.constant 0 : index
    %9 = vector.load %arg5[%c1, %c0_10, %c0_11] : memref<9x128x128xbf16, #tpu.memory_space<vmem>>, vector<1x128x128xbf16>
    %10 = vector.shape_cast %9 : vector<1x128x128xbf16> to vector<128x128xbf16>
    %cst_12 = arith.constant dense<0.000000e+00> : vector<64x128xf32>
    %11 = tpu.matmul %8, %10, %cst_12 {dimension_numbers = #tpu.dot_dimension_numbers<[1], [0], [0], [1], [0, 0, 1, 1], [], []>} : vector<64x128xbf16>, vector<128x128xbf16>, vector<64x128xf32> -> vector<64x128xf32>
    %12 = arith.addf %5, %11 : vector<64x128xf32>
    %c0_13 = arith.constant 0 : index
    %c0_14 = arith.constant 0 : index
    %c1_15 = arith.constant 1 : index
    %c0_16 = arith.constant 0 : index
    %13 = vector.load %arg1[%c0_13, %c0_14, %c1_15, %c0_16] : memref<1x9x9x128xbf16, #tpu.memory_space<vmem>>, vector<1x8x8x128xbf16>
    %14 = vector.shape_cast %13 : vector<1x8x8x128xbf16> to vector<8x8x128xbf16>
    %15 = vector.shape_cast %14 : vector<8x8x128xbf16> to vector<64x128xbf16>
    %c2 = arith.constant 2 : index
    %c0_17 = arith.constant 0 : index
    %c0_18 = arith.constant 0 : index
    %16 = vector.load %arg5[%c2, %c0_17, %c0_18] : memref<9x128x128xbf16, #tpu.memory_space<vmem>>, vector<1x128x128xbf16>
    %17 = vector.shape_cast %16 : vector<1x128x128xbf16> to vector<128x128xbf16>
    %cst_19 = arith.constant dense<0.000000e+00> : vector<64x128xf32>
    %18 = tpu.matmul %15, %17, %cst_19 {dimension_numbers = #tpu.dot_dimension_numbers<[1], [0], [0], [1], [0, 0, 1, 1], [], []>} : vector<64x128xbf16>, vector<128x128xbf16>, vector<64x128xf32> -> vector<64x128xf32>
    %19 = arith.addf %12, %18 : vector<64x128xf32>
    %c0_20 = arith.constant 0 : index
    %c0_21 = arith.constant 0 : index
    %c0_22 = arith.constant 0 : index
    %c0_23 = arith.constant 0 : index
    %20 = vector.load %arg3[%c0_20, %c0_21, %c0_22, %c0_23] : memref<1x9x9x128xbf16, #tpu.memory_space<vmem>>, vector<1x8x8x128xbf16>
    %21 = vector.shape_cast %20 : vector<1x8x8x128xbf16> to vector<8x8x128xbf16>
    %22 = vector.shape_cast %21 : vector<8x8x128xbf16> to vector<64x128xbf16>
    %c3 = arith.constant 3 : index
    %c0_24 = arith.constant 0 : index
    %c0_25 = arith.constant 0 : index
    %23 = vector.load %arg5[%c3, %c0_24, %c0_25] : memref<9x128x128xbf16, #tpu.memory_space<vmem>>, vector<1x128x128xbf16>
    %24 = vector.shape_cast %23 : vector<1x128x128xbf16> to vector<128x128xbf16>
    %cst_26 = arith.constant dense<0.000000e+00> : vector<64x128xf32>
    %25 = tpu.matmul %22, %24, %cst_26 {dimension_numbers = #tpu.dot_dimension_numbers<[1], [0], [0], [1], [0, 0, 1, 1], [], []>} : vector<64x128xbf16>, vector<128x128xbf16>, vector<64x128xf32> -> vector<64x128xf32>
    %26 = arith.addf %19, %25 : vector<64x128xf32>
    %c0_27 = arith.constant 0 : index
    %c0_28 = arith.constant 0 : index
    %c0_29 = arith.constant 0 : index
    %c0_30 = arith.constant 0 : index
    %27 = vector.load %arg4[%c0_27, %c0_28, %c0_29, %c0_30] : memref<1x9x9x128xbf16, #tpu.memory_space<vmem>>, vector<1x8x8x128xbf16>
    %28 = vector.shape_cast %27 : vector<1x8x8x128xbf16> to vector<8x8x128xbf16>
    %29 = vector.shape_cast %28 : vector<8x8x128xbf16> to vector<64x128xbf16>
    %c4 = arith.constant 4 : index
    %c0_31 = arith.constant 0 : index
    %c0_32 = arith.constant 0 : index
    %30 = vector.load %arg5[%c4, %c0_31, %c0_32] : memref<9x128x128xbf16, #tpu.memory_space<vmem>>, vector<1x128x128xbf16>
    %31 = vector.shape_cast %30 : vector<1x128x128xbf16> to vector<128x128xbf16>
    %cst_33 = arith.constant dense<0.000000e+00> : vector<64x128xf32>
    %32 = tpu.matmul %29, %31, %cst_33 {dimension_numbers = #tpu.dot_dimension_numbers<[1], [0], [0], [1], [0, 0, 1, 1], [], []>} : vector<64x128xbf16>, vector<128x128xbf16>, vector<64x128xf32> -> vector<64x128xf32>
    %33 = arith.addf %26, %32 : vector<64x128xf32>
    %c0_34 = arith.constant 0 : index
    %c0_35 = arith.constant 0 : index
    %c1_36 = arith.constant 1 : index
    %c0_37 = arith.constant 0 : index
    %34 = vector.load %arg3[%c0_34, %c0_35, %c1_36, %c0_37] : memref<1x9x9x128xbf16, #tpu.memory_space<vmem>>, vector<1x8x8x128xbf16>
    %35 = vector.shape_cast %34 : vector<1x8x8x128xbf16> to vector<8x8x128xbf16>
    %36 = vector.shape_cast %35 : vector<8x8x128xbf16> to vector<64x128xbf16>
    %c5 = arith.constant 5 : index
    %c0_38 = arith.constant 0 : index
    %c0_39 = arith.constant 0 : index
    %37 = vector.load %arg5[%c5, %c0_38, %c0_39] : memref<9x128x128xbf16, #tpu.memory_space<vmem>>, vector<1x128x128xbf16>
    %38 = vector.shape_cast %37 : vector<1x128x128xbf16> to vector<128x128xbf16>
    %cst_40 = arith.constant dense<0.000000e+00> : vector<64x128xf32>
    %39 = tpu.matmul %36, %38, %cst_40 {dimension_numbers = #tpu.dot_dimension_numbers<[1], [0], [0], [1], [0, 0, 1, 1], [], []>} : vector<64x128xbf16>, vector<128x128xbf16>, vector<64x128xf32> -> vector<64x128xf32>
    %40 = arith.addf %33, %39 : vector<64x128xf32>
    %c0_41 = arith.constant 0 : index
    %c1_42 = arith.constant 1 : index
    %c0_43 = arith.constant 0 : index
    %c0_44 = arith.constant 0 : index
    %41 = vector.load %arg1[%c0_41, %c1_42, %c0_43, %c0_44] : memref<1x9x9x128xbf16, #tpu.memory_space<vmem>>, vector<1x8x8x128xbf16>
    %42 = vector.shape_cast %41 : vector<1x8x8x128xbf16> to vector<8x8x128xbf16>
    %43 = vector.shape_cast %42 : vector<8x8x128xbf16> to vector<64x128xbf16>
    %c6 = arith.constant 6 : index
    %c0_45 = arith.constant 0 : index
    %c0_46 = arith.constant 0 : index
    %44 = vector.load %arg5[%c6, %c0_45, %c0_46] : memref<9x128x128xbf16, #tpu.memory_space<vmem>>, vector<1x128x128xbf16>
    %45 = vector.shape_cast %44 : vector<1x128x128xbf16> to vector<128x128xbf16>
    %cst_47 = arith.constant dense<0.000000e+00> : vector<64x128xf32>
    %46 = tpu.matmul %43, %45, %cst_47 {dimension_numbers = #tpu.dot_dimension_numbers<[1], [0], [0], [1], [0, 0, 1, 1], [], []>} : vector<64x128xbf16>, vector<128x128xbf16>, vector<64x128xf32> -> vector<64x128xf32>
    %47 = arith.addf %40, %46 : vector<64x128xf32>
    %c0_48 = arith.constant 0 : index
    %c1_49 = arith.constant 1 : index
    %c0_50 = arith.constant 0 : index
    %c0_51 = arith.constant 0 : index
    %48 = vector.load %arg2[%c0_48, %c1_49, %c0_50, %c0_51] : memref<1x9x9x128xbf16, #tpu.memory_space<vmem>>, vector<1x8x8x128xbf16>
    %49 = vector.shape_cast %48 : vector<1x8x8x128xbf16> to vector<8x8x128xbf16>
    %50 = vector.shape_cast %49 : vector<8x8x128xbf16> to vector<64x128xbf16>
    %c7 = arith.constant 7 : index
    %c0_52 = arith.constant 0 : index
    %c0_53 = arith.constant 0 : index
    %51 = vector.load %arg5[%c7, %c0_52, %c0_53] : memref<9x128x128xbf16, #tpu.memory_space<vmem>>, vector<1x128x128xbf16>
    %52 = vector.shape_cast %51 : vector<1x128x128xbf16> to vector<128x128xbf16>
    %cst_54 = arith.constant dense<0.000000e+00> : vector<64x128xf32>
    %53 = tpu.matmul %50, %52, %cst_54 {dimension_numbers = #tpu.dot_dimension_numbers<[1], [0], [0], [1], [0, 0, 1, 1], [], []>} : vector<64x128xbf16>, vector<128x128xbf16>, vector<64x128xf32> -> vector<64x128xf32>
    %54 = arith.addf %47, %53 : vector<64x128xf32>
    %c0_55 = arith.constant 0 : index
    %c1_56 = arith.constant 1 : index
    %c1_57 = arith.constant 1 : index
    %c0_58 = arith.constant 0 : index
    %55 = vector.load %arg1[%c0_55, %c1_56, %c1_57, %c0_58] : memref<1x9x9x128xbf16, #tpu.memory_space<vmem>>, vector<1x8x8x128xbf16>
    %56 = vector.shape_cast %55 : vector<1x8x8x128xbf16> to vector<8x8x128xbf16>
    %57 = vector.shape_cast %56 : vector<8x8x128xbf16> to vector<64x128xbf16>
    %c8 = arith.constant 8 : index
    %c0_59 = arith.constant 0 : index
    %c0_60 = arith.constant 0 : index
    %58 = vector.load %arg5[%c8, %c0_59, %c0_60] : memref<9x128x128xbf16, #tpu.memory_space<vmem>>, vector<1x128x128xbf16>
    %59 = vector.shape_cast %58 : vector<1x128x128xbf16> to vector<128x128xbf16>
    %cst_61 = arith.constant dense<0.000000e+00> : vector<64x128xf32>
    %60 = tpu.matmul %57, %59, %cst_61 {dimension_numbers = #tpu.dot_dimension_numbers<[1], [0], [0], [1], [0, 0, 1, 1], [], []>} : vector<64x128xbf16>, vector<128x128xbf16>, vector<64x128xf32> -> vector<64x128xf32>
    %61 = arith.addf %54, %60 : vector<64x128xf32>
    %c0_62 = arith.constant 0 : index
    %c0_63 = arith.constant 0 : index
    %c0_64 = arith.constant 0 : index
    %62 = vector.load %arg6[%c0_62, %c0_63, %c0_64] : memref<1x64x128xf32, #tpu.memory_space<vmem>>, vector<1x64x128xf32>
    %63 = vector.shape_cast %62 : vector<1x64x128xf32> to vector<64x128xf32>
    %64 = vector.shape_cast %61 : vector<64x128xf32> to vector<1x64x128xf32>
    tpu.vector_store %arg6[%c0_62, %c0_63, %c0_64], %64 {strides = array<i32>} : memref<1x64x128xf32, #tpu.memory_space<vmem>>, vector<1x64x128xf32>,
    %cst_65 = arith.constant dense<0.000000e+00> : vector<128xf32>
    %65 = vector.multi_reduction <add>, %61, %cst_65 [0] : vector<64x128xf32> to vector<128xf32>
    %66 = vector.shape_cast %65 : vector<128xf32> to vector<1x128xf32>
    %c0_66 = arith.constant 0 : index
    %c0_67 = arith.constant 0 : index
    %c0_68 = arith.constant 0 : index
    %67 = vector.load %arg7[%c0_66, %c0_67, %c0_68] : memref<1x2x128xf32, #tpu.memory_space<vmem>>, vector<1x1x128xf32>
    %68 = vector.shape_cast %67 : vector<1x1x128xf32> to vector<1x128xf32>
    %69 = vector.shape_cast %66 : vector<1x128xf32> to vector<1x1x128xf32>
    tpu.vector_store %arg7[%c0_66, %c0_67, %c0_68], %69 {strides = array<i32>} : memref<1x2x128xf32, #tpu.memory_space<vmem>>, vector<1x1x128xf32>,
    %70 = arith.mulf %61, %61 : vector<64x128xf32>
    %cst_69 = arith.constant dense<0.000000e+00> : vector<128xf32>
    %71 = vector.multi_reduction <add>, %70, %cst_69 [0] : vector<64x128xf32> to vector<128xf32>
    %72 = vector.shape_cast %71 : vector<128xf32> to vector<1x128xf32>
    %c0_70 = arith.constant 0 : index
    %c1_71 = arith.constant 1 : index
    %c0_72 = arith.constant 0 : index
    %73 = vector.load %arg7[%c0_70, %c1_71, %c0_72] : memref<1x2x128xf32, #tpu.memory_space<vmem>>, vector<1x1x128xf32>
    %74 = vector.shape_cast %73 : vector<1x1x128xf32> to vector<1x128xf32>
    %75 = vector.shape_cast %72 : vector<1x128xf32> to vector<1x1x128xf32>
    tpu.vector_store %arg7[%c0_70, %c1_71, %c0_72], %75 {strides = array<i32>} : memref<1x2x128xf32, #tpu.memory_space<vmem>>, vector<1x1x128xf32>,
    return
  }
  func.func @transform_0(%arg0: i32) -> (i32, i32, i32, i32) {
    %c0_i32 = arith.constant 0 : i32
    %c0_i32_0 = arith.constant 0 : i32
    %c0_i32_1 = arith.constant 0 : i32
    %c0_i32_2 = arith.constant 0 : i32
    return %arg0, %c0_i32, %c0_i32_0, %c0_i32_1 : i32, i32, i32, i32
  }
  func.func @transform_1(%arg0: i32) -> (i32, i32, i32, i32) {
    %c0_i32 = arith.constant 0 : i32
    %c0_i32_0 = arith.constant 0 : i32
    %c0_i32_1 = arith.constant 0 : i32
    %c0_i32_2 = arith.constant 0 : i32
    return %arg0, %c0_i32, %c0_i32_0, %c0_i32_1 : i32, i32, i32, i32
  }
  func.func @transform_2(%arg0: i32) -> (i32, i32, i32, i32) {
    %c0_i32 = arith.constant 0 : i32
    %c0_i32_0 = arith.constant 0 : i32
    %c0_i32_1 = arith.constant 0 : i32
    %c0_i32_2 = arith.constant 0 : i32
    return %arg0, %c0_i32, %c0_i32_0, %c0_i32_1 : i32, i32, i32, i32
  }
  func.func @transform_3(%arg0: i32) -> (i32, i32, i32, i32) {
    %c0_i32 = arith.constant 0 : i32
    %c0_i32_0 = arith.constant 0 : i32
    %c0_i32_1 = arith.constant 0 : i32
    %c0_i32_2 = arith.constant 0 : i32
    return %arg0, %c0_i32, %c0_i32_0, %c0_i32_1 : i32, i32, i32, i32
  }
  func.func @transform_4(%arg0: i32) -> (i32, i32, i32) {
    %c0_i32 = arith.constant 0 : i32
    %c0_i32_0 = arith.constant 0 : i32
    %c0_i32_1 = arith.constant 0 : i32
    %c0_i32_2 = arith.constant 0 : i32
    return %c0_i32, %c0_i32_0, %c0_i32_1 : i32, i32, i32
  }
  func.func @transform_5(%arg0: i32) -> (i32, i32, i32) {
    %c0_i32 = arith.constant 0 : i32
    %c0_i32_0 = arith.constant 0 : i32
    %c0_i32_1 = arith.constant 0 : i32
    return %arg0, %c0_i32, %c0_i32_0 : i32, i32, i32
  }
  func.func @transform_6(%arg0: i32) -> (i32, i32, i32) {
    %c0_i32 = arith.constant 0 : i32
    %c0_i32_0 = arith.constant 0 : i32
    %c0_i32_1 = arith.constant 0 : i32
    return %arg0, %c0_i32, %c0_i32_0 : i32, i32, i32
  }
}

</mosaic_0001>

<llo_original>
// kernel: tpu_custom_call.1
$region0: #{tpu_custom_call.1}
  #allocation0 [shape = 'u32[]', space=smem, size = 0x4, offset = 0x4, fixed_abs, tag = 'smem constant byte address 0x4 - core index']
  #allocation1 [shape = 'u32[144,128]{1,0:T(1,128)}', space=vmem, size = 0x12000, scoped, tag = 'internal scratch']
  %s0 = inlined_call_operand.vmem [shape: bf16[2,9,9,128], index: 0, kind: input, shape index: {}]
  %s1 = inlined_call_operand.vmem [shape: bf16[2,9,9,128], index: 1, kind: input, shape index: {}]
  %s2 = inlined_call_operand.vmem [shape: bf16[2,9,9,128], index: 2, kind: input, shape index: {}]
  %s3 = inlined_call_operand.vmem [shape: bf16[2,9,9,128], index: 3, kind: input, shape index: {}]
  %s4 = inlined_call_operand.vmem [shape: bf16[9,128,128], index: 4, kind: input, shape index: {}]
  %s5 = inlined_call_operand.hbm [shape: f32[2,64,128], index: 5, kind: output, shape index: {0}]
  %s6 = inlined_call_operand.hbm [shape: f32[2,2,128], index: 6, kind: output, shape index: {1}]
  %7 = xla_tuple %s5, %s6
  %s8 = sld [smem:[#allocation0]]
  $region61: #{tpu_custom_call.1} parent=0
    _
  %s10 = ssub.s32 1, %s8
  %s11 = scalar_select 0, %s10, %s8
  $region1: #{tpu_custom_call.1} parent=0
    #allocation2 [shape = 'u8[65536]{0}', space=vmem, size = 0x10000, scoped, tag = 'output window, operand 0']
    #allocation3 [shape = 's32[2]{0}', space=sflag, size = 0x8, scoped, tag = 'scoped memory for tpu_custom_call.1']
    #allocation4 [shape = 'u8[2048]{0}', space=vmem, size = 0x800, scoped, tag = 'output window, operand 1']
    #allocation5 [shape = 's32[2]{0}', space=sflag, size = 0x8, scoped, tag = 'scoped memory for tpu_custom_call.1']
    %12 = vsyncpa [#allocation3], 0
    %s13 = scalar_lea.sflag [#allocation3], 1
    %14 = vsyncpa %s13, 0
    %15 = vsyncpa [#allocation5], 0
    %s16 = scalar_lea.sflag [#allocation5], 1
    %17 = vsyncpa %s16, 0
    loop: start=0, step=1, limit=4
    $region2: #{tpu_custom_call.1} parent=1 // loop_pre_header
      _
    $region3: #{tpu_custom_call.1} parent=1 // loop_header
      %s19 = sphi 0, %s23
      %p20 = scmp.ge.s32.totalorder %s19, 4
      %s29 = sphi 0, %s31
      %s32 = sphi 0, %s29
      %s33 = sphi 0, %s32
      %s49 = sphi 0, %s33
      %s55 = sphi 0, %s57
      %s58 = sphi 0, %s55
      %s59 = sphi 0, %s58
      %s75 = sphi 0, %s59
      %s81 = sphi 0, %s83
      %s84 = sphi 0, %s81
      %s85 = sphi 0, %s84
      %s101 = sphi 0, %s85
      %s107 = sphi 0, %s109
      %s110 = sphi 0, %s107
      %s111 = sphi 0, %s110
      %s127 = sphi 0, %s111
      %s131 = sphi 0, %s131
      %s133 = sphi 0, %s131
      %s134 = sphi 0, %s133
      %s148 = sphi 0, %s134
      %s154 = sphi 0, %s156
      %s157 = sphi 0, %s154
      %s158 = sphi 0, %s157
      %s174 = sphi 0, %s158
      %s180 = sphi 0, %s182
      %s183 = sphi 0, %s180
      %s184 = sphi 0, %s183
      %s200 = sphi 0, %s184
    $region4: #{tpu_custom_call.1} parent=1 // loop_header_branch
      %22 = sbr.rel (%p20) target = $region8
    $region5: #{tpu_custom_call.1} parent=1 // loop_body
      %s24 = ssub.s32 %s19, 1
      %s25 = ssub.s32 %s19, 2
      %s26 = sadd.s32 %s19, 1
      %s27 = ssub.s32 %s19, %s26
      %p28 = scmp.eq.s32.totalorder %s27, 0
      %s30 = sadd.s32 %s29, 1
      %s31 = scalar_select %p28, %s29, %s30
      %p34 = pneg %p28
      %p35 = scmp.eq.s32.totalorder %s19, 1
      %p36 = por %p34, %p35
      %p37 = scmp.ne.s32.totalorder %s29, %s32
      %p38 = scmp.eq.s32.totalorder %s19, 0
      %p39 = por %p37, %p38
      %p40 = scmp.ne.s32.totalorder %s29, %s32
      %p41 = scmp.eq.s32.totalorder %s24, 1
      %p42 = por %p40, %p41
      %p43 = scmp.ne.s32.totalorder %s32, %s33
      %p44 = scmp.eq.s32.totalorder %s24, 0
      %p45 = por %p43, %p44
      %p46 = scmp.ne.s32.totalorder %s32, %s33
      %p47 = scmp.eq.s32.totalorder %s25, 1
      %p48 = por %p46, %p47
      %p50 = scmp.ne.s32.totalorder %s33, %s49
      %p51 = scmp.eq.s32.totalorder %s25, 0
      %p52 = por %p50, %p51
      %s53 = ssub.s32 %s19, %s26
      %p54 = scmp.eq.s32.totalorder %s53, 0
      %s56 = sadd.s32 %s55, 1
      %s57 = scalar_select %p54, %s55, %s56
      %p60 = pneg %p54
      %p61 = scmp.eq.s32.totalorder %s19, 1
      %p62 = por %p60, %p61
      %p63 = scmp.ne.s32.totalorder %s55, %s58
      %p64 = scmp.eq.s32.totalorder %s19, 0
      %p65 = por %p63, %p64
      %p66 = scmp.ne.s32.totalorder %s55, %s58
      %p67 = scmp.eq.s32.totalorder %s24, 1
      %p68 = por %p66, %p67
      %p69 = scmp.ne.s32.totalorder %s58, %s59
      %p70 = scmp.eq.s32.totalorder %s24, 0
      %p71 = por %p69, %p70
      %p72 = scmp.ne.s32.totalorder %s58, %s59
      %p73 = scmp.eq.s32.totalorder %s25, 1
      %p74 = por %p72, %p73
      %p76 = scmp.ne.s32.totalorder %s59, %s75
      %p77 = scmp.eq.s32.totalorder %s25, 0
      %p78 = por %p76, %p77
      %s79 = ssub.s32 %s19, %s26
      %p80 = scmp.eq.s32.totalorder %s79, 0
      %s82 = sadd.s32 %s81, 1
      %s83 = scalar_select %p80, %s81, %s82
      %p86 = pneg %p80
      %p87 = scmp.eq.s32.totalorder %s19, 1
      %p88 = por %p86, %p87
      %p89 = scmp.ne.s32.totalorder %s81, %s84
      %p90 = scmp.eq.s32.totalorder %s19, 0
      %p91 = por %p89, %p90
      %p92 = scmp.ne.s32.totalorder %s81, %s84
      %p93 = scmp.eq.s32.totalorder %s24, 1
      %p94 = por %p92, %p93
      %p95 = scmp.ne.s32.totalorder %s84, %s85
      %p96 = scmp.eq.s32.totalorder %s24, 0
      %p97 = por %p95, %p96
      %p98 = scmp.ne.s32.totalorder %s84, %s85
      %p99 = scmp.eq.s32.totalorder %s25, 1
      %p100 = por %p98, %p99
      %p102 = scmp.ne.s32.totalorder %s85, %s101
      %p103 = scmp.eq.s32.totalorder %s25, 0
      %p104 = por %p102, %p103
      %s105 = ssub.s32 %s19, %s26
      %p106 = scmp.eq.s32.totalorder %s105, 0
      %s108 = sadd.s32 %s107, 1
      %s109 = scalar_select %p106, %s107, %s108
      %p112 = pneg %p106
      %p113 = scmp.eq.s32.totalorder %s19, 1
      %p114 = por %p112, %p113
      %p115 = scmp.ne.s32.totalorder %s107, %s110
      %p116 = scmp.eq.s32.totalorder %s19, 0
      %p117 = por %p115, %p116
      %p118 = scmp.ne.s32.totalorder %s107, %s110
      %p119 = scmp.eq.s32.totalorder %s24, 1
      %p120 = por %p118, %p119
      %p121 = scmp.ne.s32.totalorder %s110, %s111
      %p122 = scmp.eq.s32.totalorder %s24, 0
      %p123 = por %p121, %p122
      %p124 = scmp.ne.s32.totalorder %s110, %s111
      %p125 = scmp.eq.s32.totalorder %s25, 1
      %p126 = por %p124, %p125
      %p128 = scmp.ne.s32.totalorder %s111, %s127
      %p129 = scmp.eq.s32.totalorder %s25, 0
      %p130 = por %p128, %p129
      %s132 = sadd.s32 %s131, 1
      %p135 = scmp.eq.s32.totalorder %s19, 1
      %p136 = scmp.ne.s32.totalorder %s131, %s133
      %p137 = scmp.eq.s32.totalorder %s19, 0
      %p138 = por %p136, %p137
      %p139 = scmp.ne.s32.totalorder %s131, %s133
      %p140 = scmp.eq.s32.totalorder %s24, 1
      %p141 = por %p139, %p140
      %p142 = scmp.ne.s32.totalorder %s133, %s134
      %p143 = scmp.eq.s32.totalorder %s24, 0
      %p144 = por %p142, %p143
      %p145 = scmp.ne.s32.totalorder %s133, %s134
      %p146 = scmp.eq.s32.totalorder %s25, 1
      %p147 = por %p145, %p146
      %p149 = scmp.ne.s32.totalorder %s134, %s148
      %p150 = scmp.eq.s32.totalorder %s25, 0
      %p151 = por %p149, %p150
      %s152 = ssub.s32 %s19, %s26
      %p153 = scmp.eq.s32.totalorder %s152, 0
      %s155 = sadd.s32 %s154, 1
      %s156 = scalar_select %p153, %s154, %s155
      %p159 = pneg %p153
      %p160 = scmp.eq.s32.totalorder %s19, 1
      %p161 = por %p159, %p160
      %p162 = scmp.ne.s32.totalorder %s154, %s157
      %p163 = scmp.eq.s32.totalorder %s19, 0
      %p164 = por %p162, %p163
      %p165 = scmp.ne.s32.totalorder %s154, %s157
      %p166 = scmp.eq.s32.totalorder %s24, 1
      %p167 = por %p165, %p166
      %p168 = scmp.ne.s32.totalorder %s157, %s158
      %p169 = scmp.eq.s32.totalorder %s24, 0
      %p170 = por %p168, %p169
      %p171 = scmp.ne.s32.totalorder %s157, %s158
      %p172 = scmp.eq.s32.totalorder %s25, 1
      %p173 = por %p171, %p172
      %p175 = scmp.ne.s32.totalorder %s158, %s174
      %p176 = scmp.eq.s32.totalorder %s25, 0
      %p177 = por %p175, %p176
      %s178 = ssub.s32 %s19, %s26
      %p179 = scmp.eq.s32.totalorder %s178, 0
      %s181 = sadd.s32 %s180, 1
      %s182 = scalar_select %p179, %s180, %s181
      %p185 = pneg %p179
      %p186 = scmp.eq.s32.totalorder %s19, 1
      %p187 = por %p185, %p186
      %p188 = scmp.ne.s32.totalorder %s180, %s183
      %p189 = scmp.eq.s32.totalorder %s19, 0
      %p190 = por %p188, %p189
      %p191 = scmp.ne.s32.totalorder %s180, %s183
      %p192 = scmp.eq.s32.totalorder %s24, 1
      %p193 = por %p191, %p192
      %p194 = scmp.ne.s32.totalorder %s183, %s184
      %p195 = scmp.eq.s32.totalorder %s24, 0
      %p196 = por %p194, %p195
      %p197 = scmp.ne.s32.totalorder %s183, %s184
      %p198 = scmp.eq.s32.totalorder %s25, 1
      %p199 = por %p197, %p198
      %p201 = scmp.ne.s32.totalorder %s184, %s200
      %p202 = scmp.eq.s32.totalorder %s25, 0
      %p203 = por %p201, %p202
      %p204 = scmp.le.s32.totalorder 1, %s19
      %p205 = scmp.lt.s32.totalorder %s19, 3
      %p206 = pnand %p204, %p205
      %p207 = pneg %p206
      // Predicated region
      $region9: #{tpu_custom_call.1} parent=5 // pred_check
        _
      $region10: #{tpu_custom_call.1} parent=5 // pred_check_branch
        %209 = sbr.rel (%p206) target = $region12
      $region11: #{tpu_custom_call.1} parent=5 // pred_region
        %s210 = ssub.s32 %s19, 1
        // Predicated region
        $region13: #{tpu_custom_call.1} parent=11 // pred_check
          %p211 = pneg %p144
        $region14: #{tpu_custom_call.1} parent=11 // pred_check_branch
          %213 = sbr.rel (%p211) target = $region16
        $region15: #{tpu_custom_call.1} parent=11 // pred_region
          _
        $region16: #{tpu_custom_call.1} parent=11 // pred_fallthru
          _
      $region12: #{tpu_custom_call.1} parent=5 // pred_fallthru
        _
      %p214 = scmp.lt.s32.totalorder %s19, 2
      // Predicated region
      $region17: #{tpu_custom_call.1} parent=5 // pred_check
        %p215 = pneg %p214
      $region18: #{tpu_custom_call.1} parent=5 // pred_check_branch
        %217 = sbr.rel (%p215) target = $region20
      $region19: #{tpu_custom_call.1} parent=5 // pred_region
        // Predicated region
        $region21: #{tpu_custom_call.1} parent=19 // pred_check
          %p218 = pneg %p39
        $region22: #{tpu_custom_call.1} parent=19 // pred_check_branch
          %220 = sbr.rel (%p218) target = $region24
        $region23: #{tpu_custom_call.1} parent=19 // pred_region
          %p221 = scmp.lt.s32.totalorder %s19, 1
          %s222 = scalar_select %p221, %s19, 1
          %s223 = smul.addr %s222, 18
          %s224 = smul.addr %s223, 4
          %s225 = scalar_lea.vmem %s0, %s224
        $region24: #{tpu_custom_call.1} parent=19 // pred_fallthru
          _
        // Predicated region
        $region25: #{tpu_custom_call.1} parent=19 // pred_check
          %p226 = pneg %p65
        $region26: #{tpu_custom_call.1} parent=19 // pred_check_branch
          %228 = sbr.rel (%p226) target = $region28
        $region27: #{tpu_custom_call.1} parent=19 // pred_region
          %p229 = scmp.lt.s32.totalorder %s19, 1
          %s230 = scalar_select %p229, %s19, 1
          %s231 = smul.addr %s230, 18
          %s232 = smul.addr %s231, 4
          %s233 = scalar_lea.vmem %s1, %s232
        $region28: #{tpu_custom_call.1} parent=19 // pred_fallthru
          _
        // Predicated region
        $region29: #{tpu_custom_call.1} parent=19 // pred_check
          %p234 = pneg %p91
        $region30: #{tpu_custom_call.1} parent=19 // pred_check_branch
          %236 = sbr.rel (%p234) target = $region32
        $region31: #{tpu_custom_call.1} parent=19 // pred_region
          %p237 = scmp.lt.s32.totalorder %s19, 1
          %s238 = scalar_select %p237, %s19, 1
          %s239 = smul.addr %s238, 18
          %s240 = smul.addr %s239, 4
          %s241 = scalar_lea.vmem %s2, %s240
        $region32: #{tpu_custom_call.1} parent=19 // pred_fallthru
          _
        // Predicated region
        $region33: #{tpu_custom_call.1} parent=19 // pred_check
          %p242 = pneg %p117
        $region34: #{tpu_custom_call.1} parent=19 // pred_check_branch
          %244 = sbr.rel (%p242) target = $region36
        $region35: #{tpu_custom_call.1} parent=19 // pred_region
          %p245 = scmp.lt.s32.totalorder %s19, 1
          %s246 = scalar_select %p245, %s19, 1
          %s247 = smul.addr %s246, 18
          %s248 = smul.addr %s247, 4
          %s249 = scalar_lea.vmem %s3, %s248
        $region36: #{tpu_custom_call.1} parent=19 // pred_fallthru
          _
      $region20: #{tpu_custom_call.1} parent=5 // pred_fallthru
        _
      %p250 = scmp.le.s32.totalorder 1, %s19
      %p251 = scmp.lt.s32.totalorder %s19, 3
      %p252 = pnand %p250, %p251
      %p253 = pneg %p252
      // Predicated region
      $region37: #{tpu_custom_call.1} parent=5 // pred_check
        _
      $region38: #{tpu_custom_call.1} parent=5 // pred_check_branch
        %255 = sbr.rel (%p252) target = $region40
      $region39: #{tpu_custom_call.1} parent=5 // pred_region
        %s256 = ssub.s32 %s19, 1
        %p257 = scmp.lt.s32.totalorder %s24, 1
        %s258 = scalar_select %p257, %s24, 1
        %s259 = smul.addr %s258, 18
        %s260 = smul.addr %s259, 4
        %s261 = scalar_lea.vmem %s0, %s260
        %p262 = pneg %p45
        %p263 = pneg %p42
        %p264 = scmp.lt.s32.totalorder %s24, 1
        %s265 = scalar_select %p264, %s24, 1
        %s266 = smul.addr %s265, 18
        %s267 = smul.addr %s266, 4
        %s268 = scalar_lea.vmem %s1, %s267
        %p269 = pneg %p71
        %p270 = pneg %p68
        %p271 = scmp.lt.s32.totalorder %s24, 1
        %s272 = scalar_select %p271, %s24, 1
        %s273 = smul.addr %s272, 18
        %s274 = smul.addr %s273, 4
        %s275 = scalar_lea.vmem %s2, %s274
        %p276 = pneg %p97
        %p277 = pneg %p94
        %p278 = scmp.lt.s32.totalorder %s24, 1
        %s279 = scalar_select %p278, %s24, 1
        %s280 = smul.addr %s279, 18
        %s281 = smul.addr %s280, 4
        %s282 = scalar_lea.vmem %s3, %s281
        %p283 = pneg %p123
        %p284 = pneg %p120
        %p285 = pneg %p144
        %p286 = pneg %p141
        %p287 = pneg %p170
        %p288 = pneg %p167
        %s289 = sand.u32 %s157, 1
        %s290 = scalar_lea.sflag [#allocation3], %s289
        %s291 = sand.u32 %s157, 1
        %s292 = smul.addr %s291, 64
        %s293 = scalar_lea.vmem [#allocation2], %s292
        %p294 = pneg %p196
        %p295 = pneg %p193
        %s296 = sand.u32 %s183, 1
        %s297 = scalar_lea.sflag [#allocation5], %s296
        %s298 = sand.u32 %s183, 1
        %s299 = smul.addr %s298, 2
        %s300 = scalar_lea.vmem [#allocation4], %s299
        %p301 = scmp.lt.s32.totalorder %s24, 1
        %s302 = scalar_select %p301, %s24, 1
        %s303 = smul.addr %s302, 18
        %s304 = smul.addr %s303, 4
        %s305 = scalar_lea.vmem %s0, %s304
        %p306 = scmp.lt.s32.totalorder %s24, 1
        %s307 = scalar_select %p306, %s24, 1
        %s308 = smul.addr %s307, 18
        %s309 = smul.addr %s308, 4
        %s310 = scalar_lea.vmem %s1, %s309
        %p311 = scmp.lt.s32.totalorder %s24, 1
        %s312 = scalar_select %p311, %s24, 1
        %s313 = smul.addr %s312, 18
        %s314 = smul.addr %s313, 4
        %s315 = scalar_lea.vmem %s2, %s314
        %p316 = scmp.lt.s32.totalorder %s24, 1
        %s317 = scalar_select %p316, %s24, 1
        %s318 = smul.addr %s317, 18
        %s319 = smul.addr %s318, 4
        %s320 = scalar_lea.vmem %s3, %s319
        %v322 = vld [vmem:[%s305] sm:$0xf]
        %v323 = vld [vmem:[%s305 + $0x8] sm:$0xf]
        %v324 = vld [vmem:[%s305 + $0x10] sm:$0xf]
        %v325 = vld [vmem:[%s305 + $0x18] sm:$0xf]
        %v326 = vld [vmem:[%s305 + $0x20] sm:$0xf]
        %v327 = vld [vmem:[%s305 + $0x28] sm:$0xf]
        %v328 = vld [vmem:[%s305 + $0x30] sm:$0xf]
        %v329 = vld [vmem:[%s305 + $0x38] sm:$0xf]
        %v330 = vld [vmem:[%s4] sm:$0xf]
        %v331 = vld [vmem:[%s4 + $0x4] sm:$0xf]
        %v332 = vld [vmem:[%s4 + $0x8] sm:$0xf]
        %v333 = vld [vmem:[%s4 + $0xc] sm:$0xf]
        %v334 = vld [vmem:[%s4 + $0x10] sm:$0xf]
        %v335 = vld [vmem:[%s4 + $0x14] sm:$0xf]
        %v336 = vld [vmem:[%s4 + $0x18] sm:$0xf]
        %v337 = vld [vmem:[%s4 + $0x1c] sm:$0xf]
        %v338 = vld [vmem:[%s4 + $0x20] sm:$0xf]
        %v339 = vld [vmem:[%s4 + $0x24] sm:$0xf]
        %v340 = vld [vmem:[%s4 + $0x28] sm:$0xf]
        %v341 = vld [vmem:[%s4 + $0x2c] sm:$0xf]
        %v342 = vld [vmem:[%s4 + $0x30] sm:$0xf]
        %v343 = vld [vmem:[%s4 + $0x34] sm:$0xf]
        %v344 = vld [vmem:[%s4 + $0x38] sm:$0xf]
        %v345 = vld [vmem:[%s4 + $0x3c] sm:$0xf]
        %v346 = vld [vmem:[%s310] sm:$0xf]
        %v347 = vld [vmem:[%s310 + $0x8] sm:$0xf]
        %v348 = vld [vmem:[%s310 + $0x10] sm:$0xf]
        %v349 = vld [vmem:[%s310 + $0x18] sm:$0xf]
        %v350 = vld [vmem:[%s310 + $0x20] sm:$0xf]
        %v351 = vld [vmem:[%s310 + $0x28] sm:$0xf]
        %v352 = vld [vmem:[%s310 + $0x30] sm:$0xf]
        %v353 = vld [vmem:[%s310 + $0x38] sm:$0xf]
        %s354 = scalar_lea.vmem %s4, 64
        %v355 = vld [vmem:[%s354] sm:$0xf]
        %v356 = vld [vmem:[%s354 + $0x4] sm:$0xf]
        %v357 = vld [vmem:[%s354 + $0x8] sm:$0xf]
        %v358 = vld [vmem:[%s354 + $0xc] sm:$0xf]
        %v359 = vld [vmem:[%s354 + $0x10] sm:$0xf]
        %v360 = vld [vmem:[%s354 + $0x14] sm:$0xf]
        %v361 = vld [vmem:[%s354 + $0x18] sm:$0xf]
        %v362 = vld [vmem:[%s354 + $0x1c] sm:$0xf]
        %v363 = vld [vmem:[%s354 + $0x20] sm:$0xf]
        %v364 = vld [vmem:[%s354 + $0x24] sm:$0xf]
        %v365 = vld [vmem:[%s354 + $0x28] sm:$0xf]
        %v366 = vld [vmem:[%s354 + $0x2c] sm:$0xf]
        %v367 = vld [vmem:[%s354 + $0x30] sm:$0xf]
        %v368 = vld [vmem:[%s354 + $0x34] sm:$0xf]
        %v369 = vld [vmem:[%s354 + $0x38] sm:$0xf]
        %v370 = vld [vmem:[%s354 + $0x3c] sm:$0xf]
        %v379 = vunpack.c.l.b16 %v346
        %v380 = vunpack.c.l.b16 %v347
        %v381 = vunpack.c.l.b16 %v348
        %v382 = vunpack.c.l.b16 %v349
        %v383 = vunpack.c.l.b16 %v350
        %v384 = vunpack.c.l.b16 %v351
        %v385 = vunpack.c.l.b16 %v352
        %v386 = vunpack.c.l.b16 %v353
        %v387 = vpack.c.b16 %v380, %v379
        %v388 = vpack.c.b16 %v382, %v381
        %v389 = vpack.c.b16 %v384, %v383
        %v390 = vpack.c.b16 %v386, %v385
        %v411 = vunpack.c.l.b16 %v355
        %v412 = vunpack.c.l.b16 %v356
        %v413 = vunpack.c.l.b16 %v357
        %v414 = vunpack.c.l.b16 %v358
        %v415 = vunpack.c.l.b16 %v359
        %v416 = vunpack.c.l.b16 %v360
        %v417 = vunpack.c.l.b16 %v361
        %v418 = vunpack.c.l.b16 %v362
        %v419 = vunpack.c.l.b16 %v363
        %v420 = vunpack.c.l.b16 %v364
        %v421 = vunpack.c.l.b16 %v365
        %v422 = vunpack.c.l.b16 %v366
        %v423 = vunpack.c.l.b16 %v367
        %v424 = vunpack.c.l.b16 %v368
        %v425 = vunpack.c.l.b16 %v369
        %v426 = vunpack.c.l.b16 %v370
        %v427 = vpack.c.b16 %v412, %v411
        %v428 = vpack.c.b16 %v414, %v413
        %v429 = vpack.c.b16 %v416, %v415
        %v430 = vpack.c.b16 %v418, %v417
        %v431 = vpack.c.b16 %v420, %v419
        %v432 = vpack.c.b16 %v422, %v421
        %v433 = vpack.c.b16 %v424, %v423
        %v434 = vpack.c.b16 %v426, %v425
        %443 = vmatprep.subr.bf16.mxu0 0
        %444 = vmatpush1.bf16.msra.mxu0 %v427
        %445 = vmatprep.subr.bf16.mxu0 0
        %446 = vmatpush1.bf16.msra.mxu0 %v428
        %447 = vmatprep.subr.bf16.mxu0 0
        %448 = vmatpush1.bf16.msra.mxu0 %v429
        %449 = vmatprep.subr.bf16.mxu0 0
        %450 = vmatpush1.bf16.msra.mxu0 %v430
        %451 = vmatprep.subr.bf16.mxu0 0
        %452 = vmatpush1.bf16.msra.mxu0 %v431
        %453 = vmatprep.subr.bf16.mxu0 0
        %454 = vmatpush1.bf16.msra.mxu0 %v432
        %455 = vmatprep.subr.bf16.mxu0 0
        %456 = vmatpush1.bf16.msra.mxu0 %v433
        %457 = vmatprep.subr.bf16.mxu0 0
        %458 = vmatpush1.bf16.msra.mxu0 %v434
        %459 = vmatprep.subr.bf16.mxu0 0
        %460 = vmatpush1.bf16.msra.mxu0 0
        %461 = vmatprep.subr.bf16.mxu0 0
        %462 = vmatpush1.bf16.msra.mxu0 0
        %463 = vmatprep.subr.bf16.mxu0 0
        %464 = vmatpush1.bf16.msra.mxu0 0
        %465 = vmatprep.subr.bf16.mxu0 0
        %466 = vmatpush1.bf16.msra.mxu0 0
        %467 = vmatprep.subr.bf16.mxu0 0
        %468 = vmatpush1.bf16.msra.mxu0 0
        %469 = vmatprep.subr.bf16.mxu0 0
        %470 = vmatpush1.bf16.msra.mxu0 0
        %471 = vmatprep.subr.bf16.mxu0 0
        %472 = vmatpush1.bf16.msra.mxu0 0
        %473 = vmatprep.subr.bf16.mxu0 0
        %474 = vmatpush1.bf16.msra.mxu0 0
        %475 = vmatprep.mubr.bf16.mxu0 0
        %476 = vmatmul.mubr.bf16.gmra.mrb[0].mxu0 %v387
        %v477 = vpop.f32.mrb[0].mxu0
        %v478 = vadd.f32 0.0, %v477
        %v479 = vpop.f32.mrb[0].mxu0
        %v480 = vpop.f32.mrb[0].mxu0
        %v481 = vadd.f32 0.0, %v480
        %v482 = vpop.f32.mrb[0].mxu0
        %483 = vmatprep.mubr.bf16.mxu0 0
        %484 = vmatmul.mubr.bf16.gmra.mrb[0].mxu0 %v388
        %v485 = vpop.f32.mrb[0].mxu0
        %v486 = vadd.f32 0.0, %v485
        %v487 = vpop.f32.mrb[0].mxu0
        %v488 = vpop.f32.mrb[0].mxu0
        %v489 = vadd.f32 0.0, %v488
        %v490 = vpop.f32.mrb[0].mxu0
        %491 = vmatprep.mubr.bf16.mxu0 0
        %492 = vmatmul.mubr.bf16.gmra.mrb[0].mxu0 %v389
        %v493 = vpop.f32.mrb[0].mxu0
        %v494 = vadd.f32 0.0, %v493
        %v495 = vpop.f32.mrb[0].mxu0
        %v496 = vpop.f32.mrb[0].mxu0
        %v497 = vadd.f32 0.0, %v496
        %v498 = vpop.f32.mrb[0].mxu0
        %499 = vmatprep.mubr.bf16.mxu0 0
        %500 = vmatmul.mubr.bf16.gmra.mrb[0].mxu0 %v390
        %v501 = vpop.f32.mrb[0].mxu0
        %v502 = vadd.f32 0.0, %v501
        %v503 = vpop.f32.mrb[0].mxu0
        %v504 = vpop.f32.mrb[0].mxu0
        %v505 = vadd.f32 0.0, %v504
        %v506 = vpop.f32.mrb[0].mxu0
        %507 = vdwg.mxu0
        %v516 = vunpack.c.l.b16 %v322
        %v517 = vunpack.c.l.b16 %v323
        %v518 = vunpack.c.l.b16 %v324
        %v519 = vunpack.c.l.b16 %v325
        %v520 = vunpack.c.l.b16 %v326
        %v521 = vunpack.c.l.b16 %v327
        %v522 = vunpack.c.l.b16 %v328
        %v523 = vunpack.c.l.b16 %v329
        %v524 = vpack.c.b16 %v517, %v516
        %v525 = vpack.c.b16 %v519, %v518
        %v526 = vpack.c.b16 %v521, %v520
        %v527 = vpack.c.b16 %v523, %v522
        %v548 = vunpack.c.l.b16 %v330
        %v549 = vunpack.c.l.b16 %v331
        %v550 = vunpack.c.l.b16 %v332
        %v551 = vunpack.c.l.b16 %v333
        %v552 = vunpack.c.l.b16 %v334
        %v553 = vunpack.c.l.b16 %v335
        %v554 = vunpack.c.l.b16 %v336
        %v555 = vunpack.c.l.b16 %v337
        %v556 = vunpack.c.l.b16 %v338
        %v557 = vunpack.c.l.b16 %v339
        %v558 = vunpack.c.l.b16 %v340
        %v559 = vunpack.c.l.b16 %v341
        %v560 = vunpack.c.l.b16 %v342
        %v561 = vunpack.c.l.b16 %v343
        %v562 = vunpack.c.l.b16 %v344
        %v563 = vunpack.c.l.b16 %v345
        %v564 = vpack.c.b16 %v549, %v548
        %v565 = vpack.c.b16 %v551, %v550
        %v566 = vpack.c.b16 %v553, %v552
        %v567 = vpack.c.b16 %v555, %v554
        %v568 = vpack.c.b16 %v557, %v556
        %v569 = vpack.c.b16 %v559, %v558
        %v570 = vpack.c.b16 %v561, %v560
        %v571 = vpack.c.b16 %v563, %v562
        %580 = vmatprep.subr.bf16.mxu0 0
        %581 = vmatpush1.bf16.msra.mxu0 %v564
        %582 = vmatprep.subr.bf16.mxu0 0
        %583 = vmatpush1.bf16.msra.mxu0 %v565
        %584 = vmatprep.subr.bf16.mxu0 0
        %585 = vmatpush1.bf16.msra.mxu0 %v566
        %586 = vmatprep.subr.bf16.mxu0 0
        %587 = vmatpush1.bf16.msra.mxu0 %v567
        %588 = vmatprep.subr.bf16.mxu0 0
        %589 = vmatpush1.bf16.msra.mxu0 %v568
        %590 = vmatprep.subr.bf16.mxu0 0
        %591 = vmatpush1.bf16.msra.mxu0 %v569
        %592 = vmatprep.subr.bf16.mxu0 0
        %593 = vmatpush1.bf16.msra.mxu0 %v570
        %594 = vmatprep.subr.bf16.mxu0 0
        %595 = vmatpush1.bf16.msra.mxu0 %v571
        %596 = vmatprep.subr.bf16.mxu0 0
        %597 = vmatpush1.bf16.msra.mxu0 0
        %598 = vmatprep.subr.bf16.mxu0 0
        %599 = vmatpush1.bf16.msra.mxu0 0
        %600 = vmatprep.subr.bf16.mxu0 0
        %601 = vmatpush1.bf16.msra.mxu0 0
        %602 = vmatprep.subr.bf16.mxu0 0
        %603 = vmatpush1.bf16.msra.mxu0 0
        %604 = vmatprep.subr.bf16.mxu0 0
        %605 = vmatpush1.bf16.msra.mxu0 0
        %606 = vmatprep.subr.bf16.mxu0 0
        %607 = vmatpush1.bf16.msra.mxu0 0
        %608 = vmatprep.subr.bf16.mxu0 0
        %609 = vmatpush1.bf16.msra.mxu0 0
        %610 = vmatprep.subr.bf16.mxu0 0
        %611 = vmatpush1.bf16.msra.mxu0 0
        %612 = vmatprep.mubr.bf16.mxu0 0
        %613 = vmatmul.mubr.bf16.gmra.mrb[0].mxu0 %v524
        %v614 = vpop.f32.mrb[0].mxu0
        %v615 = vadd.f32 %v478, %v614
        %v616 = vpop.f32.mrb[0].mxu0
        %v617 = vpop.f32.mrb[0].mxu0
        %v618 = vadd.f32 %v481, %v617
        %v619 = vpop.f32.mrb[0].mxu0
        %620 = vmatprep.mubr.bf16.mxu0 0
        %621 = vmatmul.mubr.bf16.gmra.mrb[0].mxu0 %v525
        %v622 = vpop.f32.mrb[0].mxu0
        %v623 = vadd.f32 %v486, %v622
        %v624 = vpop.f32.mrb[0].mxu0
        %v625 = vpop.f32.mrb[0].mxu0
        %v626 = vadd.f32 %v489, %v625
        %v627 = vpop.f32.mrb[0].mxu0
        %628 = vmatprep.mubr.bf16.mxu0 0
        %629 = vmatmul.mubr.bf16.gmra.mrb[0].mxu0 %v526
        %v630 = vpop.f32.mrb[0].mxu0
        %v631 = vadd.f32 %v494, %v630
        %v632 = vpop.f32.mrb[0].mxu0
        %v633 = vpop.f32.mrb[0].mxu0
        %v634 = vadd.f32 %v497, %v633
        %v635 = vpop.f32.mrb[0].mxu0
        %636 = vmatprep.mubr.bf16.mxu0 0
        %637 = vmatmul.mubr.bf16.gmra.mrb[0].mxu0 %v527
        %v638 = vpop.f32.mrb[0].mxu0
        %v639 = vadd.f32 %v502, %v638
        %v640 = vpop.f32.mrb[0].mxu0
        %v641 = vpop.f32.mrb[0].mxu0
        %v642 = vadd.f32 %v505, %v641
        %v643 = vpop.f32.mrb[0].mxu0
        %644 = vdwg.mxu0
        %v645 = vld [vmem:[%s305] sm:$0xf]
        %v646 = vld [vmem:[%s305 + $0x4] sm:$0x1]
        %v647 = vld [vmem:[%s305 + $0x8] sm:$0xf]
        %v648 = vld [vmem:[%s305 + $0xc] sm:$0x1]
        %v649 = vld [vmem:[%s305 + $0x10] sm:$0xf]
        %v650 = vld [vmem:[%s305 + $0x14] sm:$0x1]
        %v651 = vld [vmem:[%s305 + $0x18] sm:$0xf]
        %v652 = vld [vmem:[%s305 + $0x1c] sm:$0x1]
        %v653 = vld [vmem:[%s305 + $0x20] sm:$0xf]
        %v654 = vld [vmem:[%s305 + $0x24] sm:$0x1]
        %v655 = vld [vmem:[%s305 + $0x28] sm:$0xf]
        %v656 = vld [vmem:[%s305 + $0x2c] sm:$0x1]
        %v657 = vld [vmem:[%s305 + $0x30] sm:$0xf]
        %v658 = vld [vmem:[%s305 + $0x34] sm:$0x1]
        %v659 = vld [vmem:[%s305 + $0x38] sm:$0xf]
        %v660 = vld [vmem:[%s305 + $0x3c] sm:$0x1]
        %vm661 = vsmask.f32 3328
        %vm662 = vsmask.f32 7440
        %vm663 = vmor %vm661, %vm662
        %v665 = vshrl.u32 %v645, 16
        %v667 = vrot.slane %v665, 4
        %v668 = vshll.u32 %v645, 16
        %v670 = vrot.slane %v668, 5
        %v671 = vor.u32 %v667, %v670
        %v672 = vrot.slane %v671, 4
        %v674 = vshll.u32 %v646, 16
        %v676 = vrot.slane %v674, 5
        %v677 = vsel %vm663, %v672, %v676
        %v679 = vshrl.u32 %v647, 16
        %v681 = vrot.slane %v679, 4
        %v682 = vshll.u32 %v647, 16
        %v684 = vrot.slane %v682, 5
        %v685 = vor.u32 %v681, %v684
        %v686 = vrot.slane %v685, 4
        %v688 = vshll.u32 %v648, 16
        %v690 = vrot.slane %v688, 5
        %v691 = vsel %vm663, %v686, %v690
        %v693 = vshrl.u32 %v649, 16
        %v695 = vrot.slane %v693, 4
        %v696 = vshll.u32 %v649, 16
        %v698 = vrot.slane %v696, 5
        %v699 = vor.u32 %v695, %v698
        %v700 = vrot.slane %v699, 4
        %v702 = vshll.u32 %v650, 16
        %v704 = vrot.slane %v702, 5
        %v705 = vsel %vm663, %v700, %v704
        %v707 = vshrl.u32 %v651, 16
        %v709 = vrot.slane %v707, 4
        %v710 = vshll.u32 %v651, 16
        %v712 = vrot.slane %v710, 5
        %v713 = vor.u32 %v709, %v712
        %v714 = vrot.slane %v713, 4
        %v716 = vshll.u32 %v652, 16
        %v718 = vrot.slane %v716, 5
        %v719 = vsel %vm663, %v714, %v718
        %v721 = vshrl.u32 %v653, 16
        %v723 = vrot.slane %v721, 4
        %v724 = vshll.u32 %v653, 16
        %v726 = vrot.slane %v724, 5
        %v727 = vor.u32 %v723, %v726
        %v728 = vrot.slane %v727, 4
        %v730 = vshll.u32 %v654, 16
        %v732 = vrot.slane %v730, 5
        %v733 = vsel %vm663, %v728, %v732
        %v735 = vshrl.u32 %v655, 16
        %v737 = vrot.slane %v735, 4
        %v738 = vshll.u32 %v655, 16
        %v740 = vrot.slane %v738, 5
        %v741 = vor.u32 %v737, %v740
        %v742 = vrot.slane %v741, 4
        %v744 = vshll.u32 %v656, 16
        %v746 = vrot.slane %v744, 5
        %v747 = vsel %vm663, %v742, %v746
        %v749 = vshrl.u32 %v657, 16
        %v751 = vrot.slane %v749, 4
        %v752 = vshll.u32 %v657, 16
        %v754 = vrot.slane %v752, 5
        %v755 = vor.u32 %v751, %v754
        %v756 = vrot.slane %v755, 4
        %v758 = vshll.u32 %v658, 16
        %v760 = vrot.slane %v758, 5
        %v761 = vsel %vm663, %v756, %v760
        %v763 = vshrl.u32 %v659, 16
        %v765 = vrot.slane %v763, 4
        %v766 = vshll.u32 %v659, 16
        %v768 = vrot.slane %v766, 5
        %v769 = vor.u32 %v765, %v768
        %v770 = vrot.slane %v769, 4
        %v772 = vshll.u32 %v660, 16
        %v774 = vrot.slane %v772, 5
        %v775 = vsel %vm663, %v770, %v774
        %s776 = scalar_lea.vmem %s4, 128
        %v777 = vld [vmem:[%s776] sm:$0xf]
        %v778 = vld [vmem:[%s776 + $0x4] sm:$0xf]
        %v779 = vld [vmem:[%s776 + $0x8] sm:$0xf]
        %v780 = vld [vmem:[%s776 + $0xc] sm:$0xf]
        %v781 = vld [vmem:[%s776 + $0x10] sm:$0xf]
        %v782 = vld [vmem:[%s776 + $0x14] sm:$0xf]
        %v783 = vld [vmem:[%s776 + $0x18] sm:$0xf]
        %v784 = vld [vmem:[%s776 + $0x1c] sm:$0xf]
        %v785 = vld [vmem:[%s776 + $0x20] sm:$0xf]
        %v786 = vld [vmem:[%s776 + $0x24] sm:$0xf]
        %v787 = vld [vmem:[%s776 + $0x28] sm:$0xf]
        %v788 = vld [vmem:[%s776 + $0x2c] sm:$0xf]
        %v789 = vld [vmem:[%s776 + $0x30] sm:$0xf]
        %v790 = vld [vmem:[%s776 + $0x34] sm:$0xf]
        %v791 = vld [vmem:[%s776 + $0x38] sm:$0xf]
        %v792 = vld [vmem:[%s776 + $0x3c] sm:$0xf]
        %v793 = vunpack.c.l.b16 %v677
        %v794 = vunpack.c.l.b16 %v691
        %v795 = vunpack.c.l.b16 %v705
        %v796 = vunpack.c.l.b16 %v719
        %v797 = vunpack.c.l.b16 %v733
        %v798 = vunpack.c.l.b16 %v747
        %v799 = vunpack.c.l.b16 %v761
        %v800 = vunpack.c.l.b16 %v775
        %v801 = vpack.c.b16 %v794, %v793
        %v802 = vpack.c.b16 %v796, %v795
        %v803 = vpack.c.b16 %v798, %v797
        %v804 = vpack.c.b16 %v800, %v799
        %v825 = vunpack.c.l.b16 %v777
        %v826 = vunpack.c.l.b16 %v778
        %v827 = vunpack.c.l.b16 %v779
        %v828 = vunpack.c.l.b16 %v780
        %v829 = vunpack.c.l.b16 %v781
        %v830 = vunpack.c.l.b16 %v782
        %v831 = vunpack.c.l.b16 %v783
        %v832 = vunpack.c.l.b16 %v784
        %v833 = vunpack.c.l.b16 %v785
        %v834 = vunpack.c.l.b16 %v786
        %v835 = vunpack.c.l.b16 %v787
        %v836 = vunpack.c.l.b16 %v788
        %v837 = vunpack.c.l.b16 %v789
        %v838 = vunpack.c.l.b16 %v790
        %v839 = vunpack.c.l.b16 %v791
        %v840 = vunpack.c.l.b16 %v792
        %v841 = vpack.c.b16 %v826, %v825
        %v842 = vpack.c.b16 %v828, %v827
        %v843 = vpack.c.b16 %v830, %v829
        %v844 = vpack.c.b16 %v832, %v831
        %v845 = vpack.c.b16 %v834, %v833
        %v846 = vpack.c.b16 %v836, %v835
        %v847 = vpack.c.b16 %v838, %v837
        %v848 = vpack.c.b16 %v840, %v839
        %857 = vmatprep.subr.bf16.mxu0 0
        %858 = vmatpush1.bf16.msra.mxu0 %v841
        %859 = vmatprep.subr.bf16.mxu0 0
        %860 = vmatpush1.bf16.msra.mxu0 %v842
        %861 = vmatprep.subr.bf16.mxu0 0
        %862 = vmatpush1.bf16.msra.mxu0 %v843
        %863 = vmatprep.subr.bf16.mxu0 0
        %864 = vmatpush1.bf16.msra.mxu0 %v844
        %865 = vmatprep.subr.bf16.mxu0 0
        %866 = vmatpush1.bf16.msra.mxu0 %v845
        %867 = vmatprep.subr.bf16.mxu0 0
        %868 = vmatpush1.bf16.msra.mxu0 %v846
        %869 = vmatprep.subr.bf16.mxu0 0
        %870 = vmatpush1.bf16.msra.mxu0 %v847
        %871 = vmatprep.subr.bf16.mxu0 0
        %872 = vmatpush1.bf16.msra.mxu0 %v848
        %873 = vmatprep.subr.bf16.mxu0 0
        %874 = vmatpush1.bf16.msra.mxu0 0
        %875 = vmatprep.subr.bf16.mxu0 0
        %876 = vmatpush1.bf16.msra.mxu0 0
        %877 = vmatprep.subr.bf16.mxu0 0
        %878 = vmatpush1.bf16.msra.mxu0 0
        %879 = vmatprep.subr.bf16.mxu0 0
        %880 = vmatpush1.bf16.msra.mxu0 0
        %881 = vmatprep.subr.bf16.mxu0 0
        %882 = vmatpush1.bf16.msra.mxu0 0
        %883 = vmatprep.subr.bf16.mxu0 0
        %884 = vmatpush1.bf16.msra.mxu0 0
        %885 = vmatprep.subr.bf16.mxu0 0
        %886 = vmatpush1.bf16.msra.mxu0 0
        %887 = vmatprep.subr.bf16.mxu0 0
        %888 = vmatpush1.bf16.msra.mxu0 0
        %889 = vmatprep.mubr.bf16.mxu0 0
        %890 = vmatmul.mubr.bf16.gmra.mrb[0].mxu0 %v801
        %v891 = vpop.f32.mrb[0].mxu0
        %v892 = vadd.f32 0.0, %v891
        %v893 = vpop.f32.mrb[0].mxu0
        %v894 = vpop.f32.mrb[0].mxu0
        %v895 = vadd.f32 0.0, %v894
        %v896 = vpop.f32.mrb[0].mxu0
        %897 = vmatprep.mubr.bf16.mxu0 0
        %898 = vmatmul.mubr.bf16.gmra.mrb[0].mxu0 %v802
        %v899 = vpop.f32.mrb[0].mxu0
        %v900 = vadd.f32 0.0, %v899
        %v901 = vpop.f32.mrb[0].mxu0
        %v902 = vpop.f32.mrb[0].mxu0
        %v903 = vadd.f32 0.0, %v902
        %v904 = vpop.f32.mrb[0].mxu0
        %905 = vmatprep.mubr.bf16.mxu0 0
        %906 = vmatmul.mubr.bf16.gmra.mrb[0].mxu0 %v803
        %v907 = vpop.f32.mrb[0].mxu0
        %v908 = vadd.f32 0.0, %v907
        %v909 = vpop.f32.mrb[0].mxu0
        %v910 = vpop.f32.mrb[0].mxu0
        %v911 = vadd.f32 0.0, %v910
        %v912 = vpop.f32.mrb[0].mxu0
        %913 = vmatprep.mubr.bf16.mxu0 0
        %914 = vmatmul.mubr.bf16.gmra.mrb[0].mxu0 %v804
        %v915 = vpop.f32.mrb[0].mxu0
        %v916 = vadd.f32 0.0, %v915
        %v917 = vpop.f32.mrb[0].mxu0
        %v918 = vpop.f32.mrb[0].mxu0
        %v919 = vadd.f32 0.0, %v918
        %v920 = vpop.f32.mrb[0].mxu0
        %921 = vdwg.mxu0
        %v922 = vadd.f32 %v615, %v892
        %v923 = vadd.f32 %v618, %v895
        %v924 = vadd.f32 %v623, %v900
        %v925 = vadd.f32 %v626, %v903
        %v926 = vadd.f32 %v631, %v908
        %v927 = vadd.f32 %v634, %v911
        %v928 = vadd.f32 %v639, %v916
        %v929 = vadd.f32 %v642, %v919
        %v930 = vld [vmem:[%s315] sm:$0xf]
        %v931 = vld [vmem:[%s315 + $0x8] sm:$0xf]
        %v932 = vld [vmem:[%s315 + $0x10] sm:$0xf]
        %v933 = vld [vmem:[%s315 + $0x18] sm:$0xf]
        %v934 = vld [vmem:[%s315 + $0x20] sm:$0xf]
        %v935 = vld [vmem:[%s315 + $0x28] sm:$0xf]
        %v936 = vld [vmem:[%s315 + $0x30] sm:$0xf]
        %v937 = vld [vmem:[%s315 + $0x38] sm:$0xf]
        %s938 = scalar_lea.vmem %s4, 192
        %v939 = vld [vmem:[%s938] sm:$0xf]
        %v940 = vld [vmem:[%s938 + $0x4] sm:$0xf]
        %v941 = vld [vmem:[%s938 + $0x8] sm:$0xf]
        %v942 = vld [vmem:[%s938 + $0xc] sm:$0xf]
        %v943 = vld [vmem:[%s938 + $0x10] sm:$0xf]
        %v944 = vld [vmem:[%s938 + $0x14] sm:$0xf]
        %v945 = vld [vmem:[%s938 + $0x18] sm:$0xf]
        %v946 = vld [vmem:[%s938 + $0x1c] sm:$0xf]
        %v947 = vld [vmem:[%s938 + $0x20] sm:$0xf]
        %v948 = vld [vmem:[%s938 + $0x24] sm:$0xf]
        %v949 = vld [vmem:[%s938 + $0x28] sm:$0xf]
        %v950 = vld [vmem:[%s938 + $0x2c] sm:$0xf]
        %v951 = vld [vmem:[%s938 + $0x30] sm:$0xf]
        %v952 = vld [vmem:[%s938 + $0x34] sm:$0xf]
        %v953 = vld [vmem:[%s938 + $0x38] sm:$0xf]
        %v954 = vld [vmem:[%s938 + $0x3c] sm:$0xf]
        %v963 = vunpack.c.l.b16 %v930
        %v964 = vunpack.c.l.b16 %v931
        %v965 = vunpack.c.l.b16 %v932
        %v966 = vunpack.c.l.b16 %v933
        %v967 = vunpack.c.l.b16 %v934
        %v968 = vunpack.c.l.b16 %v935
        %v969 = vunpack.c.l.b16 %v936
        %v970 = vunpack.c.l.b16 %v937
        %v971 = vpack.c.b16 %v964, %v963
        %v972 = vpack.c.b16 %v966, %v965
        %v973 = vpack.c.b16 %v968, %v967
        %v974 = vpack.c.b16 %v970, %v969
        %v995 = vunpack.c.l.b16 %v939
        %v996 = vunpack.c.l.b16 %v940
        %v997 = vunpack.c.l.b16 %v941
        %v998 = vunpack.c.l.b16 %v942
        %v999 = vunpack.c.l.b16 %v943
        %v1000 = vunpack.c.l.b16 %v944
        %v1001 = vunpack.c.l.b16 %v945
        %v1002 = vunpack.c.l.b16 %v946
        %v1003 = vunpack.c.l.b16 %v947
        %v1004 = vunpack.c.l.b16 %v948
        %v1005 = vunpack.c.l.b16 %v949
        %v1006 = vunpack.c.l.b16 %v950
        %v1007 = vunpack.c.l.b16 %v951
        %v1008 = vunpack.c.l.b16 %v952
        %v1009 = vunpack.c.l.b16 %v953
        %v1010 = vunpack.c.l.b16 %v954
        %v1011 = vpack.c.b16 %v996, %v995
        %v1012 = vpack.c.b16 %v998, %v997
        %v1013 = vpack.c.b16 %v1000, %v999
        %v1014 = vpack.c.b16 %v1002, %v1001
        %v1015 = vpack.c.b16 %v1004, %v1003
        %v1016 = vpack.c.b16 %v1006, %v1005
        %v1017 = vpack.c.b16 %v1008, %v1007
        %v1018 = vpack.c.b16 %v1010, %v1009
        %1027 = vmatprep.subr.bf16.mxu0 0
        %1028 = vmatpush1.bf16.msra.mxu0 %v1011
        %1029 = vmatprep.subr.bf16.mxu0 0
        %1030 = vmatpush1.bf16.msra.mxu0 %v1012
        %1031 = vmatprep.subr.bf16.mxu0 0
        %1032 = vmatpush1.bf16.msra.mxu0 %v1013
        %1033 = vmatprep.subr.bf16.mxu0 0
        %1034 = vmatpush1.bf16.msra.mxu0 %v1014
        %1035 = vmatprep.subr.bf16.mxu0 0
        %1036 = vmatpush1.bf16.msra.mxu0 %v1015
        %1037 = vmatprep.subr.bf16.mxu0 0
        %1038 = vmatpush1.bf16.msra.mxu0 %v1016
        %1039 = vmatprep.subr.bf16.mxu0 0
        %1040 = vmatpush1.bf16.msra.mxu0 %v1017
        %1041 = vmatprep.subr.bf16.mxu0 0
        %1042 = vmatpush1.bf16.msra.mxu0 %v1018
        %1043 = vmatprep.subr.bf16.mxu0 0
        %1044 = vmatpush1.bf16.msra.mxu0 0
        %1045 = vmatprep.subr.bf16.mxu0 0
        %1046 = vmatpush1.bf16.msra.mxu0 0
        %1047 = vmatprep.subr.bf16.mxu0 0
        %1048 = vmatpush1.bf16.msra.mxu0 0
        %1049 = vmatprep.subr.bf16.mxu0 0
        %1050 = vmatpush1.bf16.msra.mxu0 0
        %1051 = vmatprep.subr.bf16.mxu0 0
        %1052 = vmatpush1.bf16.msra.mxu0 0
        %1053 = vmatprep.subr.bf16.mxu0 0
        %1054 = vmatpush1.bf16.msra.mxu0 0
        %1055 = vmatprep.subr.bf16.mxu0 0
        %1056 = vmatpush1.bf16.msra.mxu0 0
        %1057 = vmatprep.subr.bf16.mxu0 0
        %1058 = vmatpush1.bf16.msra.mxu0 0
        %1059 = vmatprep.mubr.bf16.mxu0 0
        %1060 = vmatmul.mubr.bf16.gmra.mrb[0].mxu0 %v971
        %v1061 = vpop.f32.mrb[0].mxu0
        %v1062 = vadd.f32 0.0, %v1061
        %v1063 = vpop.f32.mrb[0].mxu0
        %v1064 = vpop.f32.mrb[0].mxu0
        %v1065 = vadd.f32 0.0, %v1064
        %v1066 = vpop.f32.mrb[0].mxu0
        %1067 = vmatprep.mubr.bf16.mxu0 0
        %1068 = vmatmul.mubr.bf16.gmra.mrb[0].mxu0 %v972
        %v1069 = vpop.f32.mrb[0].mxu0
        %v1070 = vadd.f32 0.0, %v1069
        %v1071 = vpop.f32.mrb[0].mxu0
        %v1072 = vpop.f32.mrb[0].mxu0
        %v1073 = vadd.f32 0.0, %v1072
        %v1074 = vpop.f32.mrb[0].mxu0
        %1075 = vmatprep.mubr.bf16.mxu0 0
        %1076 = vmatmul.mubr.bf16.gmra.mrb[0].mxu0 %v973
        %v1077 = vpop.f32.mrb[0].mxu0
        %v1078 = vadd.f32 0.0, %v1077
        %v1079 = vpop.f32.mrb[0].mxu0
        %v1080 = vpop.f32.mrb[0].mxu0
        %v1081 = vadd.f32 0.0, %v1080
        %v1082 = vpop.f32.mrb[0].mxu0
        %1083 = vmatprep.mubr.bf16.mxu0 0
        %1084 = vmatmul.mubr.bf16.gmra.mrb[0].mxu0 %v974
        %v1085 = vpop.f32.mrb[0].mxu0
        %v1086 = vadd.f32 0.0, %v1085
        %v1087 = vpop.f32.mrb[0].mxu0
        %v1088 = vpop.f32.mrb[0].mxu0
        %v1089 = vadd.f32 0.0, %v1088
        %v1090 = vpop.f32.mrb[0].mxu0
        %1091 = vdwg.mxu0
        %v1092 = vadd.f32 %v922, %v1062
        %v1093 = vadd.f32 %v923, %v1065
        %v1094 = vadd.f32 %v924, %v1070
        %v1095 = vadd.f32 %v925, %v1073
        %v1096 = vadd.f32 %v926, %v1078
        %v1097 = vadd.f32 %v927, %v1081
        %v1098 = vadd.f32 %v928, %v1086
        %v1099 = vadd.f32 %v929, %v1089
        %v1100 = vld [vmem:[%s320] sm:$0xf]
        %v1101 = vld [vmem:[%s320 + $0x8] sm:$0xf]
        %v1102 = vld [vmem:[%s320 + $0x10] sm:$0xf]
        %v1103 = vld [vmem:[%s320 + $0x18] sm:$0xf]
        %v1104 = vld [vmem:[%s320 + $0x20] sm:$0xf]
        %v1105 = vld [vmem:[%s320 + $0x28] sm:$0xf]
        %v1106 = vld [vmem:[%s320 + $0x30] sm:$0xf]
        %v1107 = vld [vmem:[%s320 + $0x38] sm:$0xf]
        %s1108 = scalar_lea.vmem %s4, 256
        %v1109 = vld [vmem:[%s1108] sm:$0xf]
        %v1110 = vld [vmem:[%s1108 + $0x4] sm:$0xf]
        %v1111 = vld [vmem:[%s1108 + $0x8] sm:$0xf]
        %v1112 = vld [vmem:[%s1108 + $0xc] sm:$0xf]
        %v1113 = vld [vmem:[%s1108 + $0x10] sm:$0xf]
        %v1114 = vld [vmem:[%s1108 + $0x14] sm:$0xf]
        %v1115 = vld [vmem:[%s1108 + $0x18] sm:$0xf]
        %v1116 = vld [vmem:[%s1108 + $0x1c] sm:$0xf]
        %v1117 = vld [vmem:[%s1108 + $0x20] sm:$0xf]
        %v1118 = vld [vmem:[%s1108 + $0x24] sm:$0xf]
        %v1119 = vld [vmem:[%s1108 + $0x28] sm:$0xf]
        %v1120 = vld [vmem:[%s1108 + $0x2c] sm:$0xf]
        %v1121 = vld [vmem:[%s1108 + $0x30] sm:$0xf]
        %v1122 = vld [vmem:[%s1108 + $0x34] sm:$0xf]
        %v1123 = vld [vmem:[%s1108 + $0x38] sm:$0xf]
        %v1124 = vld [vmem:[%s1108 + $0x3c] sm:$0xf]
        %v1133 = vunpack.c.l.b16 %v1100
        %v1134 = vunpack.c.l.b16 %v1101
        %v1135 = vunpack.c.l.b16 %v1102
        %v1136 = vunpack.c.l.b16 %v1103
        %v1137 = vunpack.c.l.b16 %v1104
        %v1138 = vunpack.c.l.b16 %v1105
        %v1139 = vunpack.c.l.b16 %v1106
        %v1140 = vunpack.c.l.b16 %v1107
        %v1141 = vpack.c.b16 %v1134, %v1133
        %v1142 = vpack.c.b16 %v1136, %v1135
        %v1143 = vpack.c.b16 %v1138, %v1137
        %v1144 = vpack.c.b16 %v1140, %v1139
        %v1165 = vunpack.c.l.b16 %v1109
        %v1166 = vunpack.c.l.b16 %v1110
        %v1167 = vunpack.c.l.b16 %v1111
        %v1168 = vunpack.c.l.b16 %v1112
        %v1169 = vunpack.c.l.b16 %v1113
        %v1170 = vunpack.c.l.b16 %v1114
        %v1171 = vunpack.c.l.b16 %v1115
        %v1172 = vunpack.c.l.b16 %v1116
        %v1173 = vunpack.c.l.b16 %v1117
        %v1174 = vunpack.c.l.b16 %v1118
        %v1175 = vunpack.c.l.b16 %v1119
        %v1176 = vunpack.c.l.b16 %v1120
        %v1177 = vunpack.c.l.b16 %v1121
        %v1178 = vunpack.c.l.b16 %v1122
        %v1179 = vunpack.c.l.b16 %v1123
        %v1180 = vunpack.c.l.b16 %v1124
        %v1181 = vpack.c.b16 %v1166, %v1165
        %v1182 = vpack.c.b16 %v1168, %v1167
        %v1183 = vpack.c.b16 %v1170, %v1169
        %v1184 = vpack.c.b16 %v1172, %v1171
        %v1185 = vpack.c.b16 %v1174, %v1173
        %v1186 = vpack.c.b16 %v1176, %v1175
        %v1187 = vpack.c.b16 %v1178, %v1177
        %v1188 = vpack.c.b16 %v1180, %v1179
        %1197 = vmatprep.subr.bf16.mxu0 0
        %1198 = vmatpush1.bf16.msra.mxu0 %v1181
        %1199 = vmatprep.subr.bf16.mxu0 0
        %1200 = vmatpush1.bf16.msra.mxu0 %v1182
        %1201 = vmatprep.subr.bf16.mxu0 0
        %1202 = vmatpush1.bf16.msra.mxu0 %v1183
        %1203 = vmatprep.subr.bf16.mxu0 0
        %1204 = vmatpush1.bf16.msra.mxu0 %v1184
        %1205 = vmatprep.subr.bf16.mxu0 0
        %1206 = vmatpush1.bf16.msra.mxu0 %v1185
        %1207 = vmatprep.subr.bf16.mxu0 0
        %1208 = vmatpush1.bf16.msra.mxu0 %v1186
        %1209 = vmatprep.subr.bf16.mxu0 0
        %1210 = vmatpush1.bf16.msra.mxu0 %v1187
        %1211 = vmatprep.subr.bf16.mxu0 0
        %1212 = vmatpush1.bf16.msra.mxu0 %v1188
        %1213 = vmatprep.subr.bf16.mxu0 0
        %1214 = vmatpush1.bf16.msra.mxu0 0
        %1215 = vmatprep.subr.bf16.mxu0 0
        %1216 = vmatpush1.bf16.msra.mxu0 0
        %1217 = vmatprep.subr.bf16.mxu0 0
        %1218 = vmatpush1.bf16.msra.mxu0 0
        %1219 = vmatprep.subr.bf16.mxu0 0
        %1220 = vmatpush1.bf16.msra.mxu0 0
        %1221 = vmatprep.subr.bf16.mxu0 0
        %1222 = vmatpush1.bf16.msra.mxu0 0
        %1223 = vmatprep.subr.bf16.mxu0 0
        %1224 = vmatpush1.bf16.msra.mxu0 0
        %1225 = vmatprep.subr.bf16.mxu0 0
        %1226 = vmatpush1.bf16.msra.mxu0 0
        %1227 = vmatprep.subr.bf16.mxu0 0
        %1228 = vmatpush1.bf16.msra.mxu0 0
        %1229 = vmatprep.mubr.bf16.mxu0 0
        %1230 = vmatmul.mubr.bf16.gmra.mrb[0].mxu0 %v1141
        %v1231 = vpop.f32.mrb[0].mxu0
        %v1232 = vadd.f32 0.0, %v1231
        %v1233 = vpop.f32.mrb[0].mxu0
        %v1234 = vpop.f32.mrb[0].mxu0
        %v1235 = vadd.f32 0.0, %v1234
        %v1236 = vpop.f32.mrb[0].mxu0
        %1237 = vmatprep.mubr.bf16.mxu0 0
        %1238 = vmatmul.mubr.bf16.gmra.mrb[0].mxu0 %v1142
        %v1239 = vpop.f32.mrb[0].mxu0
        %v1240 = vadd.f32 0.0, %v1239
        %v1241 = vpop.f32.mrb[0].mxu0
        %v1242 = vpop.f32.mrb[0].mxu0
        %v1243 = vadd.f32 0.0, %v1242
        %v1244 = vpop.f32.mrb[0].mxu0
        %1245 = vmatprep.mubr.bf16.mxu0 0
        %1246 = vmatmul.mubr.bf16.gmra.mrb[0].mxu0 %v1143
        %v1247 = vpop.f32.mrb[0].mxu0
        %v1248 = vadd.f32 0.0, %v1247
        %v1249 = vpop.f32.mrb[0].mxu0
        %v1250 = vpop.f32.mrb[0].mxu0
        %v1251 = vadd.f32 0.0, %v1250
        %v1252 = vpop.f32.mrb[0].mxu0
        %1253 = vmatprep.mubr.bf16.mxu0 0
        %1254 = vmatmul.mubr.bf16.gmra.mrb[0].mxu0 %v1144
        %v1255 = vpop.f32.mrb[0].mxu0
        %v1256 = vadd.f32 0.0, %v1255
        %v1257 = vpop.f32.mrb[0].mxu0
        %v1258 = vpop.f32.mrb[0].mxu0
        %v1259 = vadd.f32 0.0, %v1258
        %v1260 = vpop.f32.mrb[0].mxu0
        %1261 = vdwg.mxu0
        %v1262 = vadd.f32 %v1092, %v1232
        %v1263 = vadd.f32 %v1093, %v1235
        %v1264 = vadd.f32 %v1094, %v1240
        %v1265 = vadd.f32 %v1095, %v1243
        %v1266 = vadd.f32 %v1096, %v1248
        %v1267 = vadd.f32 %v1097, %v1251
        %v1268 = vadd.f32 %v1098, %v1256
        %v1269 = vadd.f32 %v1099, %v1259
        %v1270 = vld [vmem:[%s315] sm:$0xf]
        %v1271 = vld [vmem:[%s315 + $0x4] sm:$0x1]
        %v1272 = vld [vmem:[%s315 + $0x8] sm:$0xf]
        %v1273 = vld [vmem:[%s315 + $0xc] sm:$0x1]
        %v1274 = vld [vmem:[%s315 + $0x10] sm:$0xf]
        %v1275 = vld [vmem:[%s315 + $0x14] sm:$0x1]
        %v1276 = vld [vmem:[%s315 + $0x18] sm:$0xf]
        %v1277 = vld [vmem:[%s315 + $0x1c] sm:$0x1]
        %v1278 = vld [vmem:[%s315 + $0x20] sm:$0xf]
        %v1279 = vld [vmem:[%s315 + $0x24] sm:$0x1]
        %v1280 = vld [vmem:[%s315 + $0x28] sm:$0xf]
        %v1281 = vld [vmem:[%s315 + $0x2c] sm:$0x1]
        %v1282 = vld [vmem:[%s315 + $0x30] sm:$0xf]
        %v1283 = vld [vmem:[%s315 + $0x34] sm:$0x1]
        %v1284 = vld [vmem:[%s315 + $0x38] sm:$0xf]
        %v1285 = vld [vmem:[%s315 + $0x3c] sm:$0x1]
        %v1287 = vshrl.u32 %v1270, 16
        %v1289 = vrot.slane %v1287, 4
        %v1290 = vshll.u32 %v1270, 16
        %v1292 = vrot.slane %v1290, 5
        %v1293 = vor.u32 %v1289, %v1292
        %v1294 = vrot.slane %v1293, 4
        %v1296 = vshll.u32 %v1271, 16
        %v1298 = vrot.slane %v1296, 5
        %v1299 = vsel %vm663, %v1294, %v1298
        %v1301 = vshrl.u32 %v1272, 16
        %v1303 = vrot.slane %v1301, 4
        %v1304 = vshll.u32 %v1272, 16
        %v1306 = vrot.slane %v1304, 5
        %v1307 = vor.u32 %v1303, %v1306
        %v1308 = vrot.slane %v1307, 4
        %v1310 = vshll.u32 %v1273, 16
        %v1312 = vrot.slane %v1310, 5
        %v1313 = vsel %vm663, %v1308, %v1312
        %v1315 = vshrl.u32 %v1274, 16
        %v1317 = vrot.slane %v1315, 4
        %v1318 = vshll.u32 %v1274, 16
        %v1320 = vrot.slane %v1318, 5
        %v1321 = vor.u32 %v1317, %v1320
        %v1322 = vrot.slane %v1321, 4
        %v1324 = vshll.u32 %v1275, 16
        %v1326 = vrot.slane %v1324, 5
        %v1327 = vsel %vm663, %v1322, %v1326
        %v1329 = vshrl.u32 %v1276, 16
        %v1331 = vrot.slane %v1329, 4
        %v1332 = vshll.u32 %v1276, 16
        %v1334 = vrot.slane %v1332, 5
        %v1335 = vor.u32 %v1331, %v1334
        %v1336 = vrot.slane %v1335, 4
        %v1338 = vshll.u32 %v1277, 16
        %v1340 = vrot.slane %v1338, 5
        %v1341 = vsel %vm663, %v1336, %v1340
        %v1343 = vshrl.u32 %v1278, 16
        %v1345 = vrot.slane %v1343, 4
        %v1346 = vshll.u32 %v1278, 16
        %v1348 = vrot.slane %v1346, 5
        %v1349 = vor.u32 %v1345, %v1348
        %v1350 = vrot.slane %v1349, 4
        %v1352 = vshll.u32 %v1279, 16
        %v1354 = vrot.slane %v1352, 5
        %v1355 = vsel %vm663, %v1350, %v1354
        %v1357 = vshrl.u32 %v1280, 16
        %v1359 = vrot.slane %v1357, 4
        %v1360 = vshll.u32 %v1280, 16
        %v1362 = vrot.slane %v1360, 5
        %v1363 = vor.u32 %v1359, %v1362
        %v1364 = vrot.slane %v1363, 4
        %v1366 = vshll.u32 %v1281, 16
        %v1368 = vrot.slane %v1366, 5
        %v1369 = vsel %vm663, %v1364, %v1368
        %v1371 = vshrl.u32 %v1282, 16
        %v1373 = vrot.slane %v1371, 4
        %v1374 = vshll.u32 %v1282, 16
        %v1376 = vrot.slane %v1374, 5
        %v1377 = vor.u32 %v1373, %v1376
        %v1378 = vrot.slane %v1377, 4
        %v1380 = vshll.u32 %v1283, 16
        %v1382 = vrot.slane %v1380, 5
        %v1383 = vsel %vm663, %v1378, %v1382
        %v1385 = vshrl.u32 %v1284, 16
        %v1387 = vrot.slane %v1385, 4
        %v1388 = vshll.u32 %v1284, 16
        %v1390 = vrot.slane %v1388, 5
        %v1391 = vor.u32 %v1387, %v1390
        %v1392 = vrot.slane %v1391, 4
        %v1394 = vshll.u32 %v1285, 16
        %v1396 = vrot.slane %v1394, 5
        %v1397 = vsel %vm663, %v1392, %v1396
        %s1398 = scalar_lea.vmem %s4, 320
        %v1399 = vld [vmem:[%s1398] sm:$0xf]
        %v1400 = vld [vmem:[%s1398 + $0x4] sm:$0xf]
        %v1401 = vld [vmem:[%s1398 + $0x8] sm:$0xf]
        %v1402 = vld [vmem:[%s1398 + $0xc] sm:$0xf]
        %v1403 = vld [vmem:[%s1398 + $0x10] sm:$0xf]
        %v1404 = vld [vmem:[%s1398 + $0x14] sm:$0xf]
        %v1405 = vld [vmem:[%s1398 + $0x18] sm:$0xf]
        %v1406 = vld [vmem:[%s1398 + $0x1c] sm:$0xf]
        %v1407 = vld [vmem:[%s1398 + $0x20] sm:$0xf]
        %v1408 = vld [vmem:[%s1398 + $0x24] sm:$0xf]
        %v1409 = vld [vmem:[%s1398 + $0x28] sm:$0xf]
        %v1410 = vld [vmem:[%s1398 + $0x2c] sm:$0xf]
        %v1411 = vld [vmem:[%s1398 + $0x30] sm:$0xf]
        %v1412 = vld [vmem:[%s1398 + $0x34] sm:$0xf]
        %v1413 = vld [vmem:[%s1398 + $0x38] sm:$0xf]
        %v1414 = vld [vmem:[%s1398 + $0x3c] sm:$0xf]
        %v1415 = vunpack.c.l.b16 %v1299
        %v1416 = vunpack.c.l.b16 %v1313
        %v1417 = vunpack.c.l.b16 %v1327
        %v1418 = vunpack.c.l.b16 %v1341
        %v1419 = vunpack.c.l.b16 %v1355
        %v1420 = vunpack.c.l.b16 %v1369
        %v1421 = vunpack.c.l.b16 %v1383
        %v1422 = vunpack.c.l.b16 %v1397
        %v1423 = vpack.c.b16 %v1416, %v1415
        %v1424 = vpack.c.b16 %v1418, %v1417
        %v1425 = vpack.c.b16 %v1420, %v1419
        %v1426 = vpack.c.b16 %v1422, %v1421
        %v1447 = vunpack.c.l.b16 %v1399
        %v1448 = vunpack.c.l.b16 %v1400
        %v1449 = vunpack.c.l.b16 %v1401
        %v1450 = vunpack.c.l.b16 %v1402
        %v1451 = vunpack.c.l.b16 %v1403
        %v1452 = vunpack.c.l.b16 %v1404
        %v1453 = vunpack.c.l.b16 %v1405
        %v1454 = vunpack.c.l.b16 %v1406
        %v1455 = vunpack.c.l.b16 %v1407
        %v1456 = vunpack.c.l.b16 %v1408
        %v1457 = vunpack.c.l.b16 %v1409
        %v1458 = vunpack.c.l.b16 %v1410
        %v1459 = vunpack.c.l.b16 %v1411
        %v1460 = vunpack.c.l.b16 %v1412
        %v1461 = vunpack.c.l.b16 %v1413
        %v1462 = vunpack.c.l.b16 %v1414
        %v1463 = vpack.c.b16 %v1448, %v1447
        %v1464 = vpack.c.b16 %v1450, %v1449
        %v1465 = vpack.c.b16 %v1452, %v1451
        %v1466 = vpack.c.b16 %v1454, %v1453
        %v1467 = vpack.c.b16 %v1456, %v1455
        %v1468 = vpack.c.b16 %v1458, %v1457
        %v1469 = vpack.c.b16 %v1460, %v1459
        %v1470 = vpack.c.b16 %v1462, %v1461
        %1479 = vmatprep.subr.bf16.mxu0 0
        %1480 = vmatpush1.bf16.msra.mxu0 %v1463
        %1481 = vmatprep.subr.bf16.mxu0 0
        %1482 = vmatpush1.bf16.msra.mxu0 %v1464
        %1483 = vmatprep.subr.bf16.mxu0 0
        %1484 = vmatpush1.bf16.msra.mxu0 %v1465
        %1485 = vmatprep.subr.bf16.mxu0 0
        %1486 = vmatpush1.bf16.msra.mxu0 %v1466
        %1487 = vmatprep.subr.bf16.mxu0 0
        %1488 = vmatpush1.bf16.msra.mxu0 %v1467
        %1489 = vmatprep.subr.bf16.mxu0 0
        %1490 = vmatpush1.bf16.msra.mxu0 %v1468
        %1491 = vmatprep.subr.bf16.mxu0 0
        %1492 = vmatpush1.bf16.msra.mxu0 %v1469
        %1493 = vmatprep.subr.bf16.mxu0 0
        %1494 = vmatpush1.bf16.msra.mxu0 %v1470
        %1495 = vmatprep.subr.bf16.mxu0 0
        %1496 = vmatpush1.bf16.msra.mxu0 0
        %1497 = vmatprep.subr.bf16.mxu0 0
        %1498 = vmatpush1.bf16.msra.mxu0 0
        %1499 = vmatprep.subr.bf16.mxu0 0
        %1500 = vmatpush1.bf16.msra.mxu0 0
        %1501 = vmatprep.subr.bf16.mxu0 0
        %1502 = vmatpush1.bf16.msra.mxu0 0
        %1503 = vmatprep.subr.bf16.mxu0 0
        %1504 = vmatpush1.bf16.msra.mxu0 0
        %1505 = vmatprep.subr.bf16.mxu0 0
        %1506 = vmatpush1.bf16.msra.mxu0 0
        %1507 = vmatprep.subr.bf16.mxu0 0
        %1508 = vmatpush1.bf16.msra.mxu0 0
        %1509 = vmatprep.subr.bf16.mxu0 0
        %1510 = vmatpush1.bf16.msra.mxu0 0
        %1511 = vmatprep.mubr.bf16.mxu0 0
        %1512 = vmatmul.mubr.bf16.gmra.mrb[0].mxu0 %v1423
        %v1513 = vpop.f32.mrb[0].mxu0
        %v1514 = vadd.f32 0.0, %v1513
        %v1515 = vpop.f32.mrb[0].mxu0
        %v1516 = vpop.f32.mrb[0].mxu0
        %v1517 = vadd.f32 0.0, %v1516
        %v1518 = vpop.f32.mrb[0].mxu0
        %1519 = vmatprep.mubr.bf16.mxu0 0
        %1520 = vmatmul.mubr.bf16.gmra.mrb[0].mxu0 %v1424
        %v1521 = vpop.f32.mrb[0].mxu0
        %v1522 = vadd.f32 0.0, %v1521
        %v1523 = vpop.f32.mrb[0].mxu0
        %v1524 = vpop.f32.mrb[0].mxu0
        %v1525 = vadd.f32 0.0, %v1524
        %v1526 = vpop.f32.mrb[0].mxu0
        %1527 = vmatprep.mubr.bf16.mxu0 0
        %1528 = vmatmul.mubr.bf16.gmra.mrb[0].mxu0 %v1425
        %v1529 = vpop.f32.mrb[0].mxu0
        %v1530 = vadd.f32 0.0, %v1529
        %v1531 = vpop.f32.mrb[0].mxu0
        %v1532 = vpop.f32.mrb[0].mxu0
        %v1533 = vadd.f32 0.0, %v1532
        %v1534 = vpop.f32.mrb[0].mxu0
        %1535 = vmatprep.mubr.bf16.mxu0 0
        %1536 = vmatmul.mubr.bf16.gmra.mrb[0].mxu0 %v1426
        %v1537 = vpop.f32.mrb[0].mxu0
        %v1538 = vadd.f32 0.0, %v1537
        %v1539 = vpop.f32.mrb[0].mxu0
        %v1540 = vpop.f32.mrb[0].mxu0
        %v1541 = vadd.f32 0.0, %v1540
        %v1542 = vpop.f32.mrb[0].mxu0
        %1543 = vdwg.mxu0
        %v1544 = vadd.f32 %v1262, %v1514
        %v1545 = vadd.f32 %v1263, %v1517
        %v1546 = vadd.f32 %v1264, %v1522
        %v1547 = vadd.f32 %v1265, %v1525
        %v1548 = vadd.f32 %v1266, %v1530
        %v1549 = vadd.f32 %v1267, %v1533
        %v1550 = vadd.f32 %v1268, %v1538
        %v1551 = vadd.f32 %v1269, %v1541
        %s1552 = scalar_lea.vmem %s305, 8
        %v1553 = vld [vmem:[%s1552] sm:$0xf]
        %v1554 = vld [vmem:[%s1552 + $0x8] sm:$0xf]
        %v1555 = vld [vmem:[%s1552 + $0x10] sm:$0xf]
        %v1556 = vld [vmem:[%s1552 + $0x18] sm:$0xf]
        %v1557 = vld [vmem:[%s1552 + $0x20] sm:$0xf]
        %v1558 = vld [vmem:[%s1552 + $0x28] sm:$0xf]
        %v1559 = vld [vmem:[%s1552 + $0x30] sm:$0xf]
        %v1560 = vld [vmem:[%s1552 + $0x38] sm:$0xf]
        %s1561 = scalar_lea.vmem %s4, 384
        %v1562 = vld [vmem:[%s1561] sm:$0xf]
        %v1563 = vld [vmem:[%s1561 + $0x4] sm:$0xf]
        %v1564 = vld [vmem:[%s1561 + $0x8] sm:$0xf]
        %v1565 = vld [vmem:[%s1561 + $0xc] sm:$0xf]
        %v1566 = vld [vmem:[%s1561 + $0x10] sm:$0xf]
        %v1567 = vld [vmem:[%s1561 + $0x14] sm:$0xf]
        %v1568 = vld [vmem:[%s1561 + $0x18] sm:$0xf]
        %v1569 = vld [vmem:[%s1561 + $0x1c] sm:$0xf]
        %v1570 = vld [vmem:[%s1561 + $0x20] sm:$0xf]
        %v1571 = vld [vmem:[%s1561 + $0x24] sm:$0xf]
        %v1572 = vld [vmem:[%s1561 + $0x28] sm:$0xf]
        %v1573 = vld [vmem:[%s1561 + $0x2c] sm:$0xf]
        %v1574 = vld [vmem:[%s1561 + $0x30] sm:$0xf]
        %v1575 = vld [vmem:[%s1561 + $0x34] sm:$0xf]
        %v1576 = vld [vmem:[%s1561 + $0x38] sm:$0xf]
        %v1577 = vld [vmem:[%s1561 + $0x3c] sm:$0xf]
        %v1586 = vunpack.c.l.b16 %v1553
        %v1587 = vunpack.c.l.b16 %v1554
        %v1588 = vunpack.c.l.b16 %v1555
        %v1589 = vunpack.c.l.b16 %v1556
        %v1590 = vunpack.c.l.b16 %v1557
        %v1591 = vunpack.c.l.b16 %v1558
        %v1592 = vunpack.c.l.b16 %v1559
        %v1593 = vunpack.c.l.b16 %v1560
        %v1594 = vpack.c.b16 %v1587, %v1586
        %v1595 = vpack.c.b16 %v1589, %v1588
        %v1596 = vpack.c.b16 %v1591, %v1590
        %v1597 = vpack.c.b16 %v1593, %v1592
        %v1618 = vunpack.c.l.b16 %v1562
        %v1619 = vunpack.c.l.b16 %v1563
        %v1620 = vunpack.c.l.b16 %v1564
        %v1621 = vunpack.c.l.b16 %v1565
        %v1622 = vunpack.c.l.b16 %v1566
        %v1623 = vunpack.c.l.b16 %v1567
        %v1624 = vunpack.c.l.b16 %v1568
        %v1625 = vunpack.c.l.b16 %v1569
        %v1626 = vunpack.c.l.b16 %v1570
        %v1627 = vunpack.c.l.b16 %v1571
        %v1628 = vunpack.c.l.b16 %v1572
        %v1629 = vunpack.c.l.b16 %v1573
        %v1630 = vunpack.c.l.b16 %v1574
        %v1631 = vunpack.c.l.b16 %v1575
        %v1632 = vunpack.c.l.b16 %v1576
        %v1633 = vunpack.c.l.b16 %v1577
        %v1634 = vpack.c.b16 %v1619, %v1618
        %v1635 = vpack.c.b16 %v1621, %v1620
        %v1636 = vpack.c.b16 %v1623, %v1622
        %v1637 = vpack.c.b16 %v1625, %v1624
        %v1638 = vpack.c.b16 %v1627, %v1626
        %v1639 = vpack.c.b16 %v1629, %v1628
        %v1640 = vpack.c.b16 %v1631, %v1630
        %v1641 = vpack.c.b16 %v1633, %v1632
        %1650 = vmatprep.subr.bf16.mxu0 0
        %1651 = vmatpush1.bf16.msra.mxu0 %v1634
        %1652 = vmatprep.subr.bf16.mxu0 0
        %1653 = vmatpush1.bf16.msra.mxu0 %v1635
        %1654 = vmatprep.subr.bf16.mxu0 0
        %1655 = vmatpush1.bf16.msra.mxu0 %v1636
        %1656 = vmatprep.subr.bf16.mxu0 0
        %1657 = vmatpush1.bf16.msra.mxu0 %v1637
        %1658 = vmatprep.subr.bf16.mxu0 0
        %1659 = vmatpush1.bf16.msra.mxu0 %v1638
        %1660 = vmatprep.subr.bf16.mxu0 0
        %1661 = vmatpush1.bf16.msra.mxu0 %v1639
        %1662 = vmatprep.subr.bf16.mxu0 0
        %1663 = vmatpush1.bf16.msra.mxu0 %v1640
        %1664 = vmatprep.subr.bf16.mxu0 0
        %1665 = vmatpush1.bf16.msra.mxu0 %v1641
        %1666 = vmatprep.subr.bf16.mxu0 0
        %1667 = vmatpush1.bf16.msra.mxu0 0
        %1668 = vmatprep.subr.bf16.mxu0 0
        %1669 = vmatpush1.bf16.msra.mxu0 0
        %1670 = vmatprep.subr.bf16.mxu0 0
        %1671 = vmatpush1.bf16.msra.mxu0 0
        %1672 = vmatprep.subr.bf16.mxu0 0
        %1673 = vmatpush1.bf16.msra.mxu0 0
        %1674 = vmatprep.subr.bf16.mxu0 0
        %1675 = vmatpush1.bf16.msra.mxu0 0
        %1676 = vmatprep.subr.bf16.mxu0 0
        %1677 = vmatpush1.bf16.msra.mxu0 0
        %1678 = vmatprep.subr.bf16.mxu0 0
        %1679 = vmatpush1.bf16.msra.mxu0 0
        %1680 = vmatprep.subr.bf16.mxu0 0
        %1681 = vmatpush1.bf16.msra.mxu0 0
        %1682 = vmatprep.mubr.bf16.mxu0 0
        %1683 = vmatmul.mubr.bf16.gmra.mrb[0].mxu0 %v1594
        %v1684 = vpop.f32.mrb[0].mxu0
        %v1685 = vadd.f32 0.0, %v1684
        %v1686 = vpop.f32.mrb[0].mxu0
        %v1687 = vpop.f32.mrb[0].mxu0
        %v1688 = vadd.f32 0.0, %v1687
        %v1689 = vpop.f32.mrb[0].mxu0
        %1690 = vmatprep.mubr.bf16.mxu0 0
        %1691 = vmatmul.mubr.bf16.gmra.mrb[0].mxu0 %v1595
        %v1692 = vpop.f32.mrb[0].mxu0
        %v1693 = vadd.f32 0.0, %v1692
        %v1694 = vpop.f32.mrb[0].mxu0
        %v1695 = vpop.f32.mrb[0].mxu0
        %v1696 = vadd.f32 0.0, %v1695
        %v1697 = vpop.f32.mrb[0].mxu0
        %1698 = vmatprep.mubr.bf16.mxu0 0
        %1699 = vmatmul.mubr.bf16.gmra.mrb[0].mxu0 %v1596
        %v1700 = vpop.f32.mrb[0].mxu0
        %v1701 = vadd.f32 0.0, %v1700
        %v1702 = vpop.f32.mrb[0].mxu0
        %v1703 = vpop.f32.mrb[0].mxu0
        %v1704 = vadd.f32 0.0, %v1703
        %v1705 = vpop.f32.mrb[0].mxu0
        %1706 = vmatprep.mubr.bf16.mxu0 0
        %1707 = vmatmul.mubr.bf16.gmra.mrb[0].mxu0 %v1597
        %v1708 = vpop.f32.mrb[0].mxu0
        %v1709 = vadd.f32 0.0, %v1708
        %v1710 = vpop.f32.mrb[0].mxu0
        %v1711 = vpop.f32.mrb[0].mxu0
        %v1712 = vadd.f32 0.0, %v1711
        %v1713 = vpop.f32.mrb[0].mxu0
        %1714 = vdwg.mxu0
        %v1715 = vadd.f32 %v1544, %v1685
        %v1716 = vadd.f32 %v1545, %v1688
        %v1717 = vadd.f32 %v1546, %v1693
        %v1718 = vadd.f32 %v1547, %v1696
        %v1719 = vadd.f32 %v1548, %v1701
        %v1720 = vadd.f32 %v1549, %v1704
        %v1721 = vadd.f32 %v1550, %v1709
        %v1722 = vadd.f32 %v1551, %v1712
        %s1723 = scalar_lea.vmem %s310, 8
        %v1724 = vld [vmem:[%s1723] sm:$0xf]
        %v1725 = vld [vmem:[%s1723 + $0x8] sm:$0xf]
        %v1726 = vld [vmem:[%s1723 + $0x10] sm:$0xf]
        %v1727 = vld [vmem:[%s1723 + $0x18] sm:$0xf]
        %v1728 = vld [vmem:[%s1723 + $0x20] sm:$0xf]
        %v1729 = vld [vmem:[%s1723 + $0x28] sm:$0xf]
        %v1730 = vld [vmem:[%s1723 + $0x30] sm:$0xf]
        %v1731 = vld [vmem:[%s1723 + $0x38] sm:$0xf]
        %s1732 = scalar_lea.vmem %s4, 448
        %v1733 = vld [vmem:[%s1732] sm:$0xf]
        %v1734 = vld [vmem:[%s1732 + $0x4] sm:$0xf]
        %v1735 = vld [vmem:[%s1732 + $0x8] sm:$0xf]
        %v1736 = vld [vmem:[%s1732 + $0xc] sm:$0xf]
        %v1737 = vld [vmem:[%s1732 + $0x10] sm:$0xf]
        %v1738 = vld [vmem:[%s1732 + $0x14] sm:$0xf]
        %v1739 = vld [vmem:[%s1732 + $0x18] sm:$0xf]
        %v1740 = vld [vmem:[%s1732 + $0x1c] sm:$0xf]
        %v1741 = vld [vmem:[%s1732 + $0x20] sm:$0xf]
        %v1742 = vld [vmem:[%s1732 + $0x24] sm:$0xf]
        %v1743 = vld [vmem:[%s1732 + $0x28] sm:$0xf]
        %v1744 = vld [vmem:[%s1732 + $0x2c] sm:$0xf]
        %v1745 = vld [vmem:[%s1732 + $0x30] sm:$0xf]
        %v1746 = vld [vmem:[%s1732 + $0x34] sm:$0xf]
        %v1747 = vld [vmem:[%s1732 + $0x38] sm:$0xf]
        %v1748 = vld [vmem:[%s1732 + $0x3c] sm:$0xf]
        %v1757 = vunpack.c.l.b16 %v1724
        %v1758 = vunpack.c.l.b16 %v1725
        %v1759 = vunpack.c.l.b16 %v1726
        %v1760 = vunpack.c.l.b16 %v1727
        %v1761 = vunpack.c.l.b16 %v1728
        %v1762 = vunpack.c.l.b16 %v1729
        %v1763 = vunpack.c.l.b16 %v1730
        %v1764 = vunpack.c.l.b16 %v1731
        %v1765 = vpack.c.b16 %v1758, %v1757
        %v1766 = vpack.c.b16 %v1760, %v1759
        %v1767 = vpack.c.b16 %v1762, %v1761
        %v1768 = vpack.c.b16 %v1764, %v1763
        %v1789 = vunpack.c.l.b16 %v1733
        %v1790 = vunpack.c.l.b16 %v1734
        %v1791 = vunpack.c.l.b16 %v1735
        %v1792 = vunpack.c.l.b16 %v1736
        %v1793 = vunpack.c.l.b16 %v1737
        %v1794 = vunpack.c.l.b16 %v1738
        %v1795 = vunpack.c.l.b16 %v1739
        %v1796 = vunpack.c.l.b16 %v1740
        %v1797 = vunpack.c.l.b16 %v1741
        %v1798 = vunpack.c.l.b16 %v1742
        %v1799 = vunpack.c.l.b16 %v1743
        %v1800 = vunpack.c.l.b16 %v1744
        %v1801 = vunpack.c.l.b16 %v1745
        %v1802 = vunpack.c.l.b16 %v1746
        %v1803 = vunpack.c.l.b16 %v1747
        %v1804 = vunpack.c.l.b16 %v1748
        %v1805 = vpack.c.b16 %v1790, %v1789
        %v1806 = vpack.c.b16 %v1792, %v1791
        %v1807 = vpack.c.b16 %v1794, %v1793
        %v1808 = vpack.c.b16 %v1796, %v1795
        %v1809 = vpack.c.b16 %v1798, %v1797
        %v1810 = vpack.c.b16 %v1800, %v1799
        %v1811 = vpack.c.b16 %v1802, %v1801
        %v1812 = vpack.c.b16 %v1804, %v1803
        %1821 = vmatprep.subr.bf16.mxu0 0
        %1822 = vmatpush1.bf16.msra.mxu0 %v1805
        %1823 = vmatprep.subr.bf16.mxu0 0
        %1824 = vmatpush1.bf16.msra.mxu0 %v1806
        %1825 = vmatprep.subr.bf16.mxu0 0
        %1826 = vmatpush1.bf16.msra.mxu0 %v1807
        %1827 = vmatprep.subr.bf16.mxu0 0
        %1828 = vmatpush1.bf16.msra.mxu0 %v1808
        %1829 = vmatprep.subr.bf16.mxu0 0
        %1830 = vmatpush1.bf16.msra.mxu0 %v1809
        %1831 = vmatprep.subr.bf16.mxu0 0
        %1832 = vmatpush1.bf16.msra.mxu0 %v1810
        %1833 = vmatprep.subr.bf16.mxu0 0
        %1834 = vmatpush1.bf16.msra.mxu0 %v1811
        %1835 = vmatprep.subr.bf16.mxu0 0
        %1836 = vmatpush1.bf16.msra.mxu0 %v1812
        %1837 = vmatprep.subr.bf16.mxu0 0
        %1838 = vmatpush1.bf16.msra.mxu0 0
        %1839 = vmatprep.subr.bf16.mxu0 0
        %1840 = vmatpush1.bf16.msra.mxu0 0
        %1841 = vmatprep.subr.bf16.mxu0 0
        %1842 = vmatpush1.bf16.msra.mxu0 0
        %1843 = vmatprep.subr.bf16.mxu0 0
        %1844 = vmatpush1.bf16.msra.mxu0 0
        %1845 = vmatprep.subr.bf16.mxu0 0
        %1846 = vmatpush1.bf16.msra.mxu0 0
        %1847 = vmatprep.subr.bf16.mxu0 0
        %1848 = vmatpush1.bf16.msra.mxu0 0
        %1849 = vmatprep.subr.bf16.mxu0 0
        %1850 = vmatpush1.bf16.msra.mxu0 0
        %1851 = vmatprep.subr.bf16.mxu0 0
        %1852 = vmatpush1.bf16.msra.mxu0 0
        %1853 = vmatprep.mubr.bf16.mxu0 0
        %1854 = vmatmul.mubr.bf16.gmra.mrb[0].mxu0 %v1765
        %v1855 = vpop.f32.mrb[0].mxu0
        %v1856 = vadd.f32 0.0, %v1855
        %v1857 = vpop.f32.mrb[0].mxu0
        %v1858 = vpop.f32.mrb[0].mxu0
        %v1859 = vadd.f32 0.0, %v1858
        %v1860 = vpop.f32.mrb[0].mxu0
        %1861 = vmatprep.mubr.bf16.mxu0 0
        %1862 = vmatmul.mubr.bf16.gmra.mrb[0].mxu0 %v1766
        %v1863 = vpop.f32.mrb[0].mxu0
        %v1864 = vadd.f32 0.0, %v1863
        %v1865 = vpop.f32.mrb[0].mxu0
        %v1866 = vpop.f32.mrb[0].mxu0
        %v1867 = vadd.f32 0.0, %v1866
        %v1868 = vpop.f32.mrb[0].mxu0
        %1869 = vmatprep.mubr.bf16.mxu0 0
        %1870 = vmatmul.mubr.bf16.gmra.mrb[0].mxu0 %v1767
        %v1871 = vpop.f32.mrb[0].mxu0
        %v1872 = vadd.f32 0.0, %v1871
        %v1873 = vpop.f32.mrb[0].mxu0
        %v1874 = vpop.f32.mrb[0].mxu0
        %v1875 = vadd.f32 0.0, %v1874
        %v1876 = vpop.f32.mrb[0].mxu0
        %1877 = vmatprep.mubr.bf16.mxu0 0
        %1878 = vmatmul.mubr.bf16.gmra.mrb[0].mxu0 %v1768
        %v1879 = vpop.f32.mrb[0].mxu0
        %v1880 = vadd.f32 0.0, %v1879
        %v1881 = vpop.f32.mrb[0].mxu0
        %v1882 = vpop.f32.mrb[0].mxu0
        %v1883 = vadd.f32 0.0, %v1882
        %v1884 = vpop.f32.mrb[0].mxu0
        %1885 = vdwg.mxu0
        %v1886 = vadd.f32 %v1715, %v1856
        %v1887 = vadd.f32 %v1716, %v1859
        %v1888 = vadd.f32 %v1717, %v1864
        %v1889 = vadd.f32 %v1718, %v1867
        %v1890 = vadd.f32 %v1719, %v1872
        %v1891 = vadd.f32 %v1720, %v1875
        %v1892 = vadd.f32 %v1721, %v1880
        %v1893 = vadd.f32 %v1722, %v1883
        %v1894 = vld [vmem:[%s1552] sm:$0xf]
        %v1895 = vld [vmem:[%s1552 + $0x4] sm:$0x1]
        %v1896 = vld [vmem:[%s1552 + $0x8] sm:$0xf]
        %v1897 = vld [vmem:[%s1552 + $0xc] sm:$0x1]
        %v1898 = vld [vmem:[%s1552 + $0x10] sm:$0xf]
        %v1899 = vld [vmem:[%s1552 + $0x14] sm:$0x1]
        %v1900 = vld [vmem:[%s1552 + $0x18] sm:$0xf]
        %v1901 = vld [vmem:[%s1552 + $0x1c] sm:$0x1]
        %v1902 = vld [vmem:[%s1552 + $0x20] sm:$0xf]
        %v1903 = vld [vmem:[%s1552 + $0x24] sm:$0x1]
        %v1904 = vld [vmem:[%s1552 + $0x28] sm:$0xf]
        %v1905 = vld [vmem:[%s1552 + $0x2c] sm:$0x1]
        %v1906 = vld [vmem:[%s1552 + $0x30] sm:$0xf]
        %v1907 = vld [vmem:[%s1552 + $0x34] sm:$0x1]
        %v1908 = vld [vmem:[%s1552 + $0x38] sm:$0xf]
        %v1909 = vld [vmem:[%s1552 + $0x3c] sm:$0x1]
        %v1911 = vshrl.u32 %v1894, 16
        %v1913 = vrot.slane %v1911, 4
        %v1914 = vshll.u32 %v1894, 16
        %v1916 = vrot.slane %v1914, 5
        %v1917 = vor.u32 %v1913, %v1916
        %v1918 = vrot.slane %v1917, 4
        %v1920 = vshll.u32 %v1895, 16
        %v1922 = vrot.slane %v1920, 5
        %v1923 = vsel %vm663, %v1918, %v1922
        %v1925 = vshrl.u32 %v1896, 16
        %v1927 = vrot.slane %v1925, 4
        %v1928 = vshll.u32 %v1896, 16
        %v1930 = vrot.slane %v1928, 5
        %v1931 = vor.u32 %v1927, %v1930
        %v1932 = vrot.slane %v1931, 4
        %v1934 = vshll.u32 %v1897, 16
        %v1936 = vrot.slane %v1934, 5
        %v1937 = vsel %vm663, %v1932, %v1936
        %v1939 = vshrl.u32 %v1898, 16
        %v1941 = vrot.slane %v1939, 4
        %v1942 = vshll.u32 %v1898, 16
        %v1944 = vrot.slane %v1942, 5
        %v1945 = vor.u32 %v1941, %v1944
        %v1946 = vrot.slane %v1945, 4
        %v1948 = vshll.u32 %v1899, 16
        %v1950 = vrot.slane %v1948, 5
        %v1951 = vsel %vm663, %v1946, %v1950
        %v1953 = vshrl.u32 %v1900, 16
        %v1955 = vrot.slane %v1953, 4
        %v1956 = vshll.u32 %v1900, 16
        %v1958 = vrot.slane %v1956, 5
        %v1959 = vor.u32 %v1955, %v1958
        %v1960 = vrot.slane %v1959, 4
        %v1962 = vshll.u32 %v1901, 16
        %v1964 = vrot.slane %v1962, 5
        %v1965 = vsel %vm663, %v1960, %v1964
        %v1967 = vshrl.u32 %v1902, 16
        %v1969 = vrot.slane %v1967, 4
        %v1970 = vshll.u32 %v1902, 16
        %v1972 = vrot.slane %v1970, 5
        %v1973 = vor.u32 %v1969, %v1972
        %v1974 = vrot.slane %v1973, 4
        %v1976 = vshll.u32 %v1903, 16
        %v1978 = vrot.slane %v1976, 5
        %v1979 = vsel %vm663, %v1974, %v1978
        %v1981 = vshrl.u32 %v1904, 16
        %v1983 = vrot.slane %v1981, 4
        %v1984 = vshll.u32 %v1904, 16
        %v1986 = vrot.slane %v1984, 5
        %v1987 = vor.u32 %v1983, %v1986
        %v1988 = vrot.slane %v1987, 4
        %v1990 = vshll.u32 %v1905, 16
        %v1992 = vrot.slane %v1990, 5
        %v1993 = vsel %vm663, %v1988, %v1992
        %v1995 = vshrl.u32 %v1906, 16
        %v1997 = vrot.slane %v1995, 4
        %v1998 = vshll.u32 %v1906, 16
        %v2000 = vrot.slane %v1998, 5
        %v2001 = vor.u32 %v1997, %v2000
        %v2002 = vrot.slane %v2001, 4
        %v2004 = vshll.u32 %v1907, 16
        %v2006 = vrot.slane %v2004, 5
        %v2007 = vsel %vm663, %v2002, %v2006
        %v2009 = vshrl.u32 %v1908, 16
        %v2011 = vrot.slane %v2009, 4
        %v2012 = vshll.u32 %v1908, 16
        %v2014 = vrot.slane %v2012, 5
        %v2015 = vor.u32 %v2011, %v2014
        %v2016 = vrot.slane %v2015, 4
        %v2018 = vshll.u32 %v1909, 16
        %v2020 = vrot.slane %v2018, 5
        %v2021 = vsel %vm663, %v2016, %v2020
        %s2022 = scalar_lea.vmem %s4, 512
        %v2023 = vld [vmem:[%s2022] sm:$0xf]
        %v2024 = vld [vmem:[%s2022 + $0x4] sm:$0xf]
        %v2025 = vld [vmem:[%s2022 + $0x8] sm:$0xf]
        %v2026 = vld [vmem:[%s2022 + $0xc] sm:$0xf]
        %v2027 = vld [vmem:[%s2022 + $0x10] sm:$0xf]
        %v2028 = vld [vmem:[%s2022 + $0x14] sm:$0xf]
        %v2029 = vld [vmem:[%s2022 + $0x18] sm:$0xf]
        %v2030 = vld [vmem:[%s2022 + $0x1c] sm:$0xf]
        %v2031 = vld [vmem:[%s2022 + $0x20] sm:$0xf]
        %v2032 = vld [vmem:[%s2022 + $0x24] sm:$0xf]
        %v2033 = vld [vmem:[%s2022 + $0x28] sm:$0xf]
        %v2034 = vld [vmem:[%s2022 + $0x2c] sm:$0xf]
        %v2035 = vld [vmem:[%s2022 + $0x30] sm:$0xf]
        %v2036 = vld [vmem:[%s2022 + $0x34] sm:$0xf]
        %v2037 = vld [vmem:[%s2022 + $0x38] sm:$0xf]
        %v2038 = vld [vmem:[%s2022 + $0x3c] sm:$0xf]
        %v2039 = vunpack.c.l.b16 %v1923
        %v2040 = vunpack.c.l.b16 %v1937
        %v2041 = vunpack.c.l.b16 %v1951
        %v2042 = vunpack.c.l.b16 %v1965
        %v2043 = vunpack.c.l.b16 %v1979
        %v2044 = vunpack.c.l.b16 %v1993
        %v2045 = vunpack.c.l.b16 %v2007
        %v2046 = vunpack.c.l.b16 %v2021
        %v2047 = vpack.c.b16 %v2040, %v2039
        %v2048 = vpack.c.b16 %v2042, %v2041
        %v2049 = vpack.c.b16 %v2044, %v2043
        %v2050 = vpack.c.b16 %v2046, %v2045
        %v2071 = vunpack.c.l.b16 %v2023
        %v2072 = vunpack.c.l.b16 %v2024
        %v2073 = vunpack.c.l.b16 %v2025
        %v2074 = vunpack.c.l.b16 %v2026
        %v2075 = vunpack.c.l.b16 %v2027
        %v2076 = vunpack.c.l.b16 %v2028
        %v2077 = vunpack.c.l.b16 %v2029
        %v2078 = vunpack.c.l.b16 %v2030
        %v2079 = vunpack.c.l.b16 %v2031
        %v2080 = vunpack.c.l.b16 %v2032
        %v2081 = vunpack.c.l.b16 %v2033
        %v2082 = vunpack.c.l.b16 %v2034
        %v2083 = vunpack.c.l.b16 %v2035
        %v2084 = vunpack.c.l.b16 %v2036
        %v2085 = vunpack.c.l.b16 %v2037
        %v2086 = vunpack.c.l.b16 %v2038
        %v2087 = vpack.c.b16 %v2072, %v2071
        %v2088 = vpack.c.b16 %v2074, %v2073
        %v2089 = vpack.c.b16 %v2076, %v2075
        %v2090 = vpack.c.b16 %v2078, %v2077
        %v2091 = vpack.c.b16 %v2080, %v2079
        %v2092 = vpack.c.b16 %v2082, %v2081
        %v2093 = vpack.c.b16 %v2084, %v2083
        %v2094 = vpack.c.b16 %v2086, %v2085
        %2103 = vmatprep.subr.bf16.mxu0 0
        %2104 = vmatpush1.bf16.msra.mxu0 %v2087
        %2105 = vmatprep.subr.bf16.mxu0 0
        %2106 = vmatpush1.bf16.msra.mxu0 %v2088
        %2107 = vmatprep.subr.bf16.mxu0 0
        %2108 = vmatpush1.bf16.msra.mxu0 %v2089
        %2109 = vmatprep.subr.bf16.mxu0 0
        %2110 = vmatpush1.bf16.msra.mxu0 %v2090
        %2111 = vmatprep.subr.bf16.mxu0 0
        %2112 = vmatpush1.bf16.msra.mxu0 %v2091
        %2113 = vmatprep.subr.bf16.mxu0 0
        %2114 = vmatpush1.bf16.msra.mxu0 %v2092
        %2115 = vmatprep.subr.bf16.mxu0 0
        %2116 = vmatpush1.bf16.msra.mxu0 %v2093
        %2117 = vmatprep.subr.bf16.mxu0 0
        %2118 = vmatpush1.bf16.msra.mxu0 %v2094
        %2119 = vmatprep.subr.bf16.mxu0 0
        %2120 = vmatpush1.bf16.msra.mxu0 0
        %2121 = vmatprep.subr.bf16.mxu0 0
        %2122 = vmatpush1.bf16.msra.mxu0 0
        %2123 = vmatprep.subr.bf16.mxu0 0
        %2124 = vmatpush1.bf16.msra.mxu0 0
        %2125 = vmatprep.subr.bf16.mxu0 0
        %2126 = vmatpush1.bf16.msra.mxu0 0
        %2127 = vmatprep.subr.bf16.mxu0 0
        %2128 = vmatpush1.bf16.msra.mxu0 0
        %2129 = vmatprep.subr.bf16.mxu0 0
        %2130 = vmatpush1.bf16.msra.mxu0 0
        %2131 = vmatprep.subr.bf16.mxu0 0
        %2132 = vmatpush1.bf16.msra.mxu0 0
        %2133 = vmatprep.subr.bf16.mxu0 0
        %2134 = vmatpush1.bf16.msra.mxu0 0
        %2135 = vmatprep.mubr.bf16.mxu0 0
        %2136 = vmatmul.mubr.bf16.gmra.mrb[0].mxu0 %v2047
        %v2137 = vpop.f32.mrb[0].mxu0
        %v2138 = vadd.f32 0.0, %v2137
        %v2139 = vpop.f32.mrb[0].mxu0
        %v2140 = vpop.f32.mrb[0].mxu0
        %v2141 = vadd.f32 0.0, %v2140
        %v2142 = vpop.f32.mrb[0].mxu0
        %2143 = vmatprep.mubr.bf16.mxu0 0
        %2144 = vmatmul.mubr.bf16.gmra.mrb[0].mxu0 %v2048
        %v2145 = vpop.f32.mrb[0].mxu0
        %v2146 = vadd.f32 0.0, %v2145
        %v2147 = vpop.f32.mrb[0].mxu0
        %v2148 = vpop.f32.mrb[0].mxu0
        %v2149 = vadd.f32 0.0, %v2148
        %v2150 = vpop.f32.mrb[0].mxu0
        %2151 = vmatprep.mubr.bf16.mxu0 0
        %2152 = vmatmul.mubr.bf16.gmra.mrb[0].mxu0 %v2049
        %v2153 = vpop.f32.mrb[0].mxu0
        %v2154 = vadd.f32 0.0, %v2153
        %v2155 = vpop.f32.mrb[0].mxu0
        %v2156 = vpop.f32.mrb[0].mxu0
        %v2157 = vadd.f32 0.0, %v2156
        %v2158 = vpop.f32.mrb[0].mxu0
        %2159 = vmatprep.mubr.bf16.mxu0 0
        %2160 = vmatmul.mubr.bf16.gmra.mrb[0].mxu0 %v2050
        %v2161 = vpop.f32.mrb[0].mxu0
        %v2162 = vadd.f32 0.0, %v2161
        %v2163 = vpop.f32.mrb[0].mxu0
        %v2164 = vpop.f32.mrb[0].mxu0
        %v2165 = vadd.f32 0.0, %v2164
        %v2166 = vpop.f32.mrb[0].mxu0
        %2167 = vdwg.mxu0
        %v2168 = vadd.f32 %v1886, %v2138
        %v2169 = vadd.f32 %v1887, %v2141
        %v2170 = vadd.f32 %v1888, %v2146
        %v2171 = vadd.f32 %v1889, %v2149
        %v2172 = vadd.f32 %v1890, %v2154
        %v2173 = vadd.f32 %v1891, %v2157
        %v2174 = vadd.f32 %v1892, %v2162
        %v2175 = vadd.f32 %v1893, %v2165
        %2176 = vst [vmem:[%s293] sm:$0xff] %v2168
        %2177 = vst [vmem:[%s293 + $0x8] sm:$0xff] %v2169
        %2178 = vst [vmem:[%s293 + $0x10] sm:$0xff] %v2170
        %2179 = vst [vmem:[%s293 + $0x18] sm:$0xff] %v2171
        %2180 = vst [vmem:[%s293 + $0x20] sm:$0xff] %v2172
        %2181 = vst [vmem:[%s293 + $0x28] sm:$0xff] %v2173
        %2182 = vst [vmem:[%s293 + $0x30] sm:$0xff] %v2174
        %2183 = vst [vmem:[%s293 + $0x38] sm:$0xff] %v2175
        %v2184 = vadd.f32 %v2168, %v2169
        %v2185 = vadd.f32 %v2184, %v2170
        %v2186 = vadd.f32 %v2185, %v2171
        %v2187 = vadd.f32 %v2186, %v2172
        %v2188 = vadd.f32 %v2187, %v2173
        %v2189 = vadd.f32 %v2188, %v2174
        %v2190 = vadd.f32 %v2189, %v2175
        %v2191 = vrot.slane %v2190, 4
        %v2192 = vadd.f32 %v2190, %v2191
        %v2193 = vrot.slane %v2192, 2
        %v2194 = vadd.f32 %v2192, %v2193
        %v2195 = vrot.slane %v2194, 1
        %v2196 = vadd.f32 %v2194, %v2195
        %2197 = vst [vmem:[%s300] sm:$0x1] %v2196
        %v2198 = vmul.f32 %v2168, %v2168
        %v2199 = vmul.f32 %v2169, %v2169
        %v2200 = vmul.f32 %v2170, %v2170
        %v2201 = vmul.f32 %v2171, %v2171
        %v2202 = vmul.f32 %v2172, %v2172
        %v2203 = vmul.f32 %v2173, %v2173
        %v2204 = vmul.f32 %v2174, %v2174
        %v2205 = vmul.f32 %v2175, %v2175
        %v2206 = vadd.f32 %v2198, %v2199
        %v2207 = vadd.f32 %v2206, %v2200
        %v2208 = vadd.f32 %v2207, %v2201
        %v2209 = vadd.f32 %v2208, %v2202
        %v2210 = vadd.f32 %v2209, %v2203
        %v2211 = vadd.f32 %v2210, %v2204
        %v2212 = vadd.f32 %v2211, %v2205
        %v2213 = vrot.slane %v2212, 4
        %v2214 = vadd.f32 %v2212, %v2213
        %v2215 = vrot.slane %v2214, 2
        %v2216 = vadd.f32 %v2214, %v2215
        %v2217 = vrot.slane %v2216, 1
        %v2218 = vadd.f32 %v2216, %v2217
        %2219 = vst [vmem:[%s300 + $0x1] sm:$0x1] %v2218
        %s2220 = sand.u32 %s157, 1
        %s2221 = scalar_lea.sflag [#allocation3], %s2220
        %s2222 = sand.u32 %s157, 1
        %s2223 = smul.addr %s2222, 64
        %s2224 = scalar_lea.vmem [#allocation2], %s2223
        %s2225 = sand.u32 %s183, 1
        %s2226 = scalar_lea.sflag [#allocation5], %s2225
        %s2227 = sand.u32 %s183, 1
        %s2228 = smul.addr %s2227, 2
        %s2229 = scalar_lea.vmem [#allocation4], %s2228
        // Predicated region
        $region41: #{tpu_custom_call.1} parent=39 // pred_check
          %p2230 = pneg %p167
        $region42: #{tpu_custom_call.1} parent=39 // pred_check_branch
          %2232 = sbr.rel (%p2230) target = $region44
        $region43: #{tpu_custom_call.1} parent=39 // pred_region
          %s2234 = ssub.s32 1024, 1024
          %2235 = vsyncadd %s2221, %s2234
          %s2236 = smul.addr %s24, 8
          %s2237 = smul.addr %s2236, 128
          %s2238 = scalar_lea.hbm %s5, %s2237
          %s2239 = sshll.u32 %s2224, 4
          %s2240 = int_to_ptr.vmem [resolvable:$true] %s2239
          %2245 = dma.vmem_to_hbm [thread:$0]  %s2240, 1024, %s2238, %s2221, 128, 128, 8
        $region44: #{tpu_custom_call.1} parent=39 // pred_fallthru
          _
        // Predicated region
        $region45: #{tpu_custom_call.1} parent=39 // pred_check
          %p2246 = pneg %p193
        $region46: #{tpu_custom_call.1} parent=39 // pred_check_branch
          %2248 = sbr.rel (%p2246) target = $region48
        $region47: #{tpu_custom_call.1} parent=39 // pred_region
          %s2250 = ssub.s32 32, 32
          %2251 = vsyncadd %s2226, %s2250
          %s2252 = smul.addr %s24, 32
          %s2253 = scalar_lea.hbm %s6, %s2252
          %s2255 = sshll.u32 %s2229, 4
          %s2256 = int_to_ptr.vmem [resolvable:$true] %s2255
          %2258 = dma.vmem_to_hbm [thread:$0]  %s2256, 32, %s2253, %s2226
        $region48: #{tpu_custom_call.1} parent=39 // pred_fallthru
          _
      $region40: #{tpu_custom_call.1} parent=5 // pred_fallthru
        _
      %p2259 = scmp.le.s32.totalorder 2, %s19
      // Predicated region
      $region49: #{tpu_custom_call.1} parent=5 // pred_check
        %p2260 = pneg %p2259
      $region50: #{tpu_custom_call.1} parent=5 // pred_check_branch
        %2262 = sbr.rel (%p2260) target = $region52
      $region51: #{tpu_custom_call.1} parent=5 // pred_region
        %s2263 = ssub.s32 %s19, 2
        // Predicated region
        $region53: #{tpu_custom_call.1} parent=51 // pred_check
          %p2264 = pneg %p173
        $region54: #{tpu_custom_call.1} parent=51 // pred_check_branch
          %2266 = sbr.rel (%p2264) target = $region56
        $region55: #{tpu_custom_call.1} parent=51 // pred_region
          %s2267 = sand.u32 %s158, 1
          %s2268 = scalar_lea.sflag [#allocation3], %s2267
          %s2269 = sand.u32 %s158, 1
          %s2270 = smul.addr %s2269, 64
          %s2271 = scalar_lea.vmem [#allocation2], %s2270
          %2272 = dma.done %s2268, 1024
        $region56: #{tpu_custom_call.1} parent=51 // pred_fallthru
          _
        // Predicated region
        $region57: #{tpu_custom_call.1} parent=51 // pred_check
          %p2273 = pneg %p199
        $region58: #{tpu_custom_call.1} parent=51 // pred_check_branch
          %2275 = sbr.rel (%p2273) target = $region60
        $region59: #{tpu_custom_call.1} parent=51 // pred_region
          %s2276 = sand.u32 %s184, 1
          %s2277 = scalar_lea.sflag [#allocation5], %s2276
          %s2278 = sand.u32 %s184, 1
          %s2279 = smul.addr %s2278, 2
          %s2280 = scalar_lea.vmem [#allocation4], %s2279
          %2281 = dma.done %s2277, 32
        $region60: #{tpu_custom_call.1} parent=51 // pred_fallthru
          _
      $region52: #{tpu_custom_call.1} parent=5 // pred_fallthru
        _
    $region6: #{tpu_custom_call.1} parent=1 // loop_footer
      %s23 = sadd.s32 1, %s19
    $region7: #{tpu_custom_call.1} parent=1 // loop_footer_branch
      %18 = sbr.rel target = $region3
    $region8: #{tpu_custom_call.1} parent=1 // loop_exit
      _
    %2282 = vsyncpa [#allocation3], 1
    %s2283 = scalar_lea.sflag [#allocation3], 1
    %2284 = vsyncpa %s2283, 1
    %2285 = vsyncpa [#allocation5], 1
    %s2286 = scalar_lea.sflag [#allocation5], 1
    %2287 = vsyncpa %s2286, 1

</llo_original>
